<compile_context>
chip_gen: v7x
topology: tpu7x:2x2x1
jax: 0.10.0
libtpu: 0.0.40
codegen_flags: <defaults>
</compile_context>

<pallas_src>
import math
from functools import partial

import jax
import jax.numpy as jnp
from jax.experimental import pallas as pl
from jax.experimental.pallas import tpu as pltpu

LRELU_SLOPE = 0.1


def get_2d_padding(kernel_size, dilation=(1, 1)):
    return ((kernel_size[0] - 1) * dilation[0] // 2,
            (kernel_size[1] - 1) * dilation[1] // 2)


# ----------------------------------------------------------------------------
# Fused matmul kernel: out = act(A @ B + bias)  (A cast to bf16, B bf16, f32 acc)
# ----------------------------------------------------------------------------
def _mm_bias_act_kernel(a_ref, b_ref, bias_ref, o_ref, *, negative_slope):
    acc = jnp.dot(a_ref[...].astype(jnp.bfloat16), b_ref[...],
                  preferred_element_type=jnp.float32)
    acc = acc + bias_ref[...]
    if negative_slope is not None:
        acc = jnp.where(acc >= 0.0, acc, negative_slope * acc)
    o_ref[...] = acc.astype(o_ref.dtype)


def matmul_bias_act(a, b, bias, negative_slope=None, tm=512):
    """a: (M, K) f32, b: (K, N), bias: (N,) -> (M, N) f32.  Only M is padded."""
    M, K = a.shape
    K2, N = b.shape
    assert K == K2
    if M >= tm:
        TM = tm
        Mp = pl.cdiv(M, TM) * TM
    else:
        TM = Mp = max(8, ((M + 7) // 8) * 8)
    if Mp != M:
        a = jnp.pad(a, ((0, Mp - M), (0, 0)))
    bias2 = bias.reshape(1, N).astype(jnp.float32)
    out = pl.pallas_call(
        partial(_mm_bias_act_kernel, negative_slope=negative_slope),
        out_shape=jax.ShapeDtypeStruct((Mp, N), jnp.float32),
        grid_spec=pltpu.PrefetchScalarGridSpec(
            num_scalar_prefetch=0,
            grid=(Mp // TM,),
            in_specs=[
                pl.BlockSpec((TM, K), lambda i: (i, 0)),
                pl.BlockSpec((K, N), lambda i: (0, 0)),
                pl.BlockSpec((1, N), lambda i: (0, 0)),
            ],
            out_specs=pl.BlockSpec((TM, N), lambda i: (i, 0)),
        ),
        compiler_params=pltpu.CompilerParams(dimension_semantics=("parallel",)),
    )(a.astype(jnp.float32), b.astype(jnp.bfloat16), bias2)
    return out[:M] if Mp != M else out


# ----------------------------------------------------------------------------
# Fused grouped Conv2d kernel (NHWC): in-kernel shift-accumulate over KH*KW taps.
# ----------------------------------------------------------------------------
def _conv_tap_kernel(x_ref, w_ref, b_ref, o_ref, *,
                     kh, kw, sw, dh, ho_n, wo_n, cin, negative_slope):
    # x_ref: (Hp, Wg, sw*Cin) f32   w_ref: (kh*kw, Cin, Cout) bf16
    # b_ref: (1, Cout) f32          o_ref: (Ho, Wo, Cout) f32
    cout = o_ref.shape[-1]
    bias = b_ref[...]

    def one_row(ho, carry):
        acc = jnp.zeros((wo_n, cout), jnp.float32)
        for i in range(kh):
            plane = x_ref[ho + i * dh]                      # (Wg, sw*Cin), dynamic row
            for j in range(kw):
                c0 = (j % sw) * cin
                a = plane[j // sw:j // sw + wo_n, c0:c0 + cin]   # (Wo, Cin)
                acc = acc + jnp.dot(a.astype(jnp.bfloat16), w_ref[i * kw + j],
                                    preferred_element_type=jnp.float32)
        acc = acc + bias
        if negative_slope is not None:
            acc = jnp.where(acc >= 0.0, acc, negative_slope * acc)
        o_ref[ho] = acc.astype(o_ref.dtype)
        return carry

    jax.lax.fori_loop(0, ho_n, one_row, 0)


def conv2d_grouped(x, w, b, *, kh, kw, stride_w=1, dil_h=1, pad_h=0, pad_w=0,
                   negative_slope=None):
    """Grouped NHWC conv (H-stride 1, W-dilation 1).

    x: (G, B, H, W, Cin) f32   w: (G, kh*kw, Cin, Cout) bf16   b: (G, 1, Cout) f32
    returns (G, B, Ho, Wo, Cout) f32
    """
    G, B, H, W, Cin = x.shape
    Cout = w.shape[-1]
    sw, dh = stride_w, dil_h
    Hp = H + 2 * pad_h
    Wp = W + 2 * pad_w
    Ho = Hp - (kh - 1) * dh
    Wo = (Wp - kw) // sw + 1
    Wp_pad = ((Wp + sw - 1) // sw) * sw
    xp = jnp.pad(x, ((0, 0), (0, 0), (pad_h, pad_h),
                     (pad_w, pad_w + Wp_pad - Wp), (0, 0)))
    Wg = Wp_pad // sw
    Cg = sw * Cin
    xg = xp.reshape(G, B, Hp, Wg, Cg)          # free reshape: groups W columns by stride
    khw = kh * kw

    kernel = partial(_conv_tap_kernel, kh=kh, kw=kw, sw=sw, dh=dh,
                     ho_n=Ho, wo_n=Wo, cin=Cin, negative_slope=negative_slope)
    return pl.pallas_call(
        kernel,
        out_shape=jax.ShapeDtypeStruct((G, B, Ho, Wo, Cout), jnp.float32),
        grid_spec=pltpu.PrefetchScalarGridSpec(
            num_scalar_prefetch=0,
            grid=(G, B),
            in_specs=[
                pl.BlockSpec((None, None, Hp, Wg, Cg), lambda g, n: (g, n, 0, 0, 0)),
                pl.BlockSpec((None, khw, Cin, Cout), lambda g, n: (g, 0, 0, 0)),
                pl.BlockSpec((None, 1, Cout), lambda g, n: (g, 0, 0)),
            ],
            out_specs=pl.BlockSpec((None, None, Ho, Wo, Cout),
                                   lambda g, n: (g, n, 0, 0, 0)),
        ),
        compiler_params=pltpu.CompilerParams(
            dimension_semantics=("parallel", "parallel")),
    )(xg, w.astype(jnp.bfloat16), b.astype(jnp.float32))


# ----------------------------------------------------------------------------
# Front-end: lane-dense polyphase x2 resampler and direct complex CQT filterbank
# ----------------------------------------------------------------------------
def make_resample_filter(taps=33):
    n = jnp.arange(taps, dtype=jnp.float32) - taps // 2
    h = jnp.sinc(n / 2.0)
    win = 0.5 * (1.0 + jnp.cos(jnp.pi * n / (taps // 2 + 1)))
    h = h * win
    return (2.0 * h / jnp.sum(h)).astype(jnp.float32)


def make_polyphase_resample_weights(h, frame=128):
    # Banded weights: column n of the even/odd half produces output sample 2n / 2n+1.
    taps = h.shape[0]
    P = frame + 16
    p = jnp.arange(P)[:, None]
    n = jnp.arange(frame)[None, :]
    d = p - n
    h_even = h[jnp.clip(2 * d, 0, taps - 1)]
    h_odd = h[jnp.clip(2 * d - 1, 0, taps - 1)]
    w_even = jnp.where((d >= 0) & (d <= 16), h_even, 0.0)
    w_odd = jnp.where((d >= 1) & (d <= 16), h_odd, 0.0)
    return jnp.concatenate([w_even, w_odd], axis=1).astype(jnp.float32)   # (144, 256)


def resample_x2(x, w_poly, frame=128):
    B, L = x.shape
    Lp = ((L + frame - 1) // frame) * frame
    if Lp != L:
        x = jnp.pad(x, ((0, 0), (0, Lp - L)))
    nf = Lp // frame
    xp = jnp.pad(x, ((0, 0), (8, 8)))
    idx = (jnp.arange(nf) * frame)[:, None] + jnp.arange(frame + 16)[None, :]
    frames = xp[:, idx].reshape(B * nf, frame + 16)
    y = matmul_bias_act(frames, w_poly, jnp.zeros((2 * frame,), jnp.float32))
    y = y.reshape(B, nf, 2, frame)
    y = jnp.transpose(y, (0, 1, 3, 2)).reshape(B, 2 * Lp)   # interleave even/odd
    return y[:, :2 * L]


def make_cqt_kernels(n_bins, bins_per_octave, fs2, win=256):
    q = 1.0 / (2.0 ** (1.0 / bins_per_octave) - 1.0)
    fmin = 32.70319566257483
    k = jnp.arange(n_bins, dtype=jnp.float32)
    freqs = fmin * 2.0 ** (k / bins_per_octave)
    freqs = jnp.minimum(freqs, 0.45 * fs2)                  # synthetic Nyquist cap
    lengths = jnp.clip(jnp.ceil(q * fs2 / freqs), 8.0, float(win))
    t = (jnp.arange(win, dtype=jnp.float32) - win // 2)[None, :]
    half = lengths[:, None] / 2.0
    mask = (jnp.abs(t) <= half).astype(jnp.float32)
    hann = 0.5 * (1.0 + jnp.cos(jnp.pi * t / jnp.maximum(half, 1.0))) * mask
    phase = 2.0 * jnp.pi * freqs[:, None] * t / fs2
    kr = hann * jnp.cos(phase) / lengths[:, None]
    ki = -hann * jnp.sin(phase) / lengths[:, None]
    k2 = jnp.stack([kr, ki], axis=1).reshape(2 * n_bins, win)   # interleave re/im
    return jnp.transpose(k2).astype(jnp.bfloat16)               # (win, 2*n_bins)


def cqt_transform(x2, kernels, hop):
    B, L2 = x2.shape
    win = kernels.shape[0]
    n2 = kernels.shape[1]
    T = L2 // hop + 1
    pad = win // 2
    xp = jnp.pad(x2, ((0, 0), (pad, pad)))
    idx = (jnp.arange(T) * hop)[:, None] + jnp.arange(win)[None, :]
    frames = xp[:, idx].reshape(B * T, win)
    out = matmul_bias_act(frames, kernels, jnp.zeros((n2,), jnp.float32))
    return out.reshape(B, T, n2 // 2, 2)                    # (B, T, n_bins, [re, im])


# ----------------------------------------------------------------------------
# Parameters (deterministic synthetic init; weight_norm with g = ||v|| -> w == v)
# ----------------------------------------------------------------------------
def init_norm_conv2d(key, out_ch, in_ch, kh, kw):
    k1, k2 = jax.random.split(key)
    fan_in = in_ch * kh * kw
    v = jax.random.normal(k1, (out_ch, in_ch, kh, kw), jnp.float32) / math.sqrt(fan_in)
    b = 0.01 * jax.random.normal(k2, (out_ch,), jnp.float32)
    wk = jnp.transpose(v, (2, 3, 1, 0)).reshape(kh * kw, in_ch, out_ch)
    return wk.astype(jnp.bfloat16), b.reshape(1, out_ch)


PRE_SPEC = dict(kh=3, kw=9, stride_w=1, dil_h=1, pad_h=1, pad_w=4)
CONV_SPECS = (
    dict(kh=3, kw=9, stride_w=1, dil_h=1, pad_h=1, pad_w=4),
    dict(kh=3, kw=9, stride_w=2, dil_h=1, pad_h=1, pad_w=4),
    dict(kh=3, kw=9, stride_w=2, dil_h=2, pad_h=2, pad_w=4),
    dict(kh=3, kw=9, stride_w=2, dil_h=4, pad_h=4, pad_w=4),
    dict(kh=3, kw=3, stride_w=1, dil_h=1, pad_h=1, pad_w=1),
)
POST_SPEC = dict(kh=3, kw=3, stride_w=1, dil_h=1, pad_h=1, pad_w=1)


def init_discriminator_cqt(key, cfg, hop_length, n_octaves, bins_per_octave):
    filters = cfg["filters"]
    max_filters = cfg["max_filters"]
    filters_scale = cfg["filters_scale"]
    dilations = cfg["dilations"]
    in_channels = cfg["in_channels"]
    out_channels = cfg["out_channels"]

    params = {}

    pres_w, pres_b = [], []
    for _ in range(n_octaves):
        key, sub = jax.random.split(key)
        wk, bk = init_norm_conv2d(sub, in_channels * 2, in_channels * 2, 3, 9)
        pres_w.append(wk)
        pres_b.append(bk)
    params["pres_w"] = jnp.stack(pres_w)                    # (n_oct, 27, 2, 2) bf16
    params["pres_b"] = jnp.stack(pres_b)                    # (n_oct, 1, 2) f32

    convs_w, convs_b = [], []
    key, sub = jax.random.split(key)
    wk, bk = init_norm_conv2d(sub, filters, in_channels * 2, 3, 9)
    convs_w.append(wk[None]); convs_b.append(bk[None])
    in_chs = min(filters_scale * filters, max_filters)
    for i, _d in enumerate(dilations):
        out_chs = min(filters_scale ** (i + 1) * filters, max_filters)
        key, sub = jax.random.split(key)
        wk, bk = init_norm_conv2d(sub, out_chs, in_chs, 3, 9)
        convs_w.append(wk[None]); convs_b.append(bk[None])
        in_chs = out_chs
    out_chs = min(filters_scale ** (len(dilations) + 1) * filters, max_filters)
    key, sub = jax.random.split(key)
    wk, bk = init_norm_conv2d(sub, out_chs, in_chs, 3, 3)
    convs_w.append(wk[None]); convs_b.append(bk[None])
    params["convs_w"] = convs_w
    params["convs_b"] = convs_b

    key, sub = jax.random.split(key)
    wk, bk = init_norm_conv2d(sub, out_channels, out_chs, 3, 3)
    params["post_w"] = wk[None]
    params["post_b"] = bk[None]

    fs2 = float(cfg["sampling_rate"] * 2)
    params["cqt_kernels"] = make_cqt_kernels(n_octaves * bins_per_octave,
                                             bins_per_octave, fs2, win=256)
    return params


def init_multiscale(key, sample_rate):
    cfg = {
        "hop_lengths": [512, 256, 256],
        "sampling_rate": sample_rate,
        "filters": 32,
        "max_filters": 1024,
        "filters_scale": 1,
        "dilations": [1, 2, 4],
        "in_channels": 1,
        "out_channels": 1,
        "n_octaves": [9, 9, 9],
        "bins_per_octaves": [24, 36, 48],
    }
    static_cfgs = tuple(
        (cfg["hop_lengths"][i], cfg["n_octaves"][i], cfg["bins_per_octaves"][i])
        for i in range(len(cfg["hop_lengths"])))
    discs = []
    for hop, n_oct, bpo in static_cfgs:
        key, sub = jax.random.split(key)
        discs.append(init_discriminator_cqt(sub, cfg, hop, n_oct, bpo))
    resample_w = make_polyphase_resample_weights(make_resample_filter(33))
    return cfg, static_cfgs, discs, resample_w


# ----------------------------------------------------------------------------
# Forward passes
# ----------------------------------------------------------------------------
def discriminator_cqt_forward(static_cfg, p, x2):
    hop, n_oct, bpo = static_cfg
    B = x2.shape[0]
    z = cqt_transform(x2, p["cqt_kernels"], hop)            # (B, T, n_bins, 2) f32
    T = z.shape[1]
    n_bins = n_oct * bpo

    # 9 per-octave conv_pre layers in one pallas_call (group grid axis).
    z_oct = jnp.transpose(z.reshape(B, T, n_oct, bpo, 2), (2, 0, 1, 3, 4))
    pre = conv2d_grouped(z_oct, p["pres_w"], p["pres_b"],
                         negative_slope=None, **PRE_SPEC)   # (n_oct, B, T, bpo, 2)
    latent = jnp.transpose(pre, (1, 2, 0, 3, 4)).reshape(1, B, T, n_bins, 2)

    fmap = []
    for w, bb, spec in zip(p["convs_w"], p["convs_b"], CONV_SPECS):
        latent = conv2d_grouped(latent, w, bb, negative_slope=LRELU_SLOPE, **spec)
        fmap.append(latent[0])
    out = conv2d_grouped(latent, p["post_w"], p["post_b"],
                         negative_slope=None, **POST_SPEC)[0]
    return out, fmap


@partial(jax.jit, static_argnums=(0,))
def multiscale_forward(static_cfgs, discs, resample_w, y, y_hat):
    b0 = y.shape[0]
    x = jnp.concatenate([y, y_hat], axis=0)                 # shared weights -> one pass
    x2 = resample_x2(x, resample_w)                         # hoisted: same for all scales
    y_d_rs, y_d_gs, fmap_rs, fmap_gs = [], [], [], []
    for cfg_i, p in zip(static_cfgs, discs):
        out, fmap = discriminator_cqt_forward(cfg_i, p, x2)
        out = jnp.transpose(out, (0, 3, 1, 2))              # NHWC -> NCHW (module-facing)
        fmap = [jnp.transpose(f, (0, 3, 1, 2)) for f in fmap]
        y_d_rs.append(out[:b0])
        y_d_gs.append(out[b0:])
        fmap_rs.append([f[:b0] for f in fmap])
        fmap_gs.append([f[b0:] for f in fmap])
    return y_d_rs, y_d_gs, fmap_rs, fmap_gs


# ----------------------------------------------------------------------------
# Small numerical self-check of the fused conv kernel against lax.conv
# ----------------------------------------------------------------------------
def _conv_reference(x, w, b, *, kh, kw, stride_w, dil_h, pad_h, pad_w, negative_slope):
    G, B, H, W, Cin = x.shape
    Cout = w.shape[-1]
    outs = []
    for g in range(G):
        wf = w[g].astype(jnp.float32).reshape(kh, kw, Cin, Cout)
        o = jax.lax.conv_general_dilated(
            x[g], wf, window_strides=(1, stride_w),
            padding=((pad_h, pad_h), (pad_w, pad_w)),
            rhs_dilation=(dil_h, 1),
            dimension_numbers=("NHWC", "HWIO", "NHWC"),
            precision=jax.lax.Precision.HIGHEST)
        o = o + b[g].reshape(1, 1, 1, Cout)
        if negative_slope is not None:
            o = jnp.where(o >= 0.0, o, negative_slope * o)
        outs.append(o)
    return jnp.stack(outs, axis=0)


def _self_test_conv(key):
    cases = [
        (4, 8, dict(kh=3, kw=9, stride_w=2, dil_h=2, pad_h=2, pad_w=4), LRELU_SLOPE),
        (3, 5, dict(kh=3, kw=3, stride_w=1, dil_h=1, pad_h=1, pad_w=1), None),
    ]
    for cin, cout, spec, slope in cases:
        k1, k2, k3, key = jax.random.split(key, 4)
        G, B, H, W = 2, 2, 6, 22
        x = jax.random.normal(k1, (G, B, H, W, cin), jnp.float32)
        x = x.astype(jnp.bfloat16).astype(jnp.float32)      # make inputs bf16-exact
        w = jax.random.normal(k2, (G, spec["kh"] * spec["kw"], cin, cout),
                              jnp.float32).astype(jnp.bfloat16)
        b = 0.1 * jax.random.normal(k3, (G, 1, cout), jnp.float32)
        got = conv2d_grouped(x, w, b, negative_slope=slope, **spec)
        want = _conv_reference(x, w, b, negative_slope=slope, **spec)
        err = float(jnp.max(jnp.abs(got - want)))
        assert err < 2e-2, f"conv self-test mismatch: max abs err {err}"


if __name__ == "__main__":
    key = jax.random.PRNGKey(0)
    k_params, k_y, k_g, k_test = jax.random.split(key, 4)

    _self_test_conv(k_test)

    sample_rate = 16000
    B, L = 2, 1024                       # small clip: batch=2, 1024 samples
    y = 0.1 * jax.random.normal(k_y, (B, L), jnp.float32)
    y_hat = 0.1 * jax.random.normal(k_g, (B, L), jnp.float32)

    cfg, static_cfgs, discs, resample_w = init_multiscale(k_params, sample_rate)
    outs = multiscale_forward(static_cfgs, discs, resample_w, y, y_hat)
    jax.block_until_ready(outs)

    y_d_rs, y_d_gs, fmap_rs, fmap_gs = outs
    assert len(y_d_rs) == 3 and len(y_d_gs) == 3
    assert all(len(f) == 5 for f in fmap_rs) and all(len(f) == 5 for f in fmap_gs)
    assert all(o.shape[0] == B and o.shape[1] == 1 for o in y_d_rs)
    assert all(bool(jnp.all(jnp.isfinite(o))) for o in y_d_rs + y_d_gs)

    print("KERNEL_OK")
</pallas_src>

<mosaic_0001>
module attributes {stable_mosaic.version = 11 : i64} {
  func.func @_conv_tap_kernel(%arg0: i32, %arg1: i32, %arg2: memref<1x1x10x15x8xf32, #tpu.memory_space<vmem>>, %arg3: memref<1x27x4x8xbf16, #tpu.memory_space<vmem>>, %arg4: memref<1x1x8xf32, #tpu.memory_space<vmem>>, %arg5: memref<1x1x6x11x8xf32, #tpu.memory_space<vmem>>) attributes {dimension_semantics = [#tpu.dimension_semantics<parallel>, #tpu.dimension_semantics<parallel>], iteration_bounds = array<i64: 2, 2>, scalar_prefetch = 0 : i64, scratch_operands = 0 : i64, tpu.core_type = #tpu.core_type<tc>, window_params = [{transform_indices = @transform_0, window_bounds = array<i64: 1, 1, 10, 15, 8>}, {transform_indices = @transform_1, window_bounds = array<i64: 1, 27, 4, 8>}, {transform_indices = @transform_2, window_bounds = array<i64: 1, 1, 8>}, {transform_indices = @transform_3, window_bounds = array<i64: 1, 1, 6, 11, 8>}]} {
    %c0 = arith.constant 0 : index
    %c0_0 = arith.constant 0 : index
    %c0_1 = arith.constant 0 : index
    %0 = vector.load %arg4[%c0, %c0_0, %c0_1] : memref<1x1x8xf32, #tpu.memory_space<vmem>>, vector<1x1x8xf32>
    %1 = vector.shape_cast %0 : vector<1x1x8xf32> to vector<1x8xf32>
    %c0_i32 = arith.constant 0 : i32
    %c6_i32 = arith.constant 6 : i32
    %2 = arith.addi %c0_i32, %c6_i32 : i32
    %c1_i32 = arith.constant 1 : i32
    scf.for %arg6 = %c0_i32 to %2 step %c1_i32  : i32 {
      %cst = arith.constant 0.000000e+00 : f32
      %3 = vector.broadcast %cst : f32 to vector<11x8xf32>
      %c0_i32_3 = arith.constant 0 : i32
      %4 = arith.addi %arg6, %c0_i32_3 : i32
      %c0_4 = arith.constant 0 : index
      %c0_5 = arith.constant 0 : index
      %5 = arith.index_cast %4 : i32 to index
      %c0_6 = arith.constant 0 : index
      %c0_7 = arith.constant 0 : index
      %6 = vector.load %arg2[%c0_4, %c0_5, %5, %c0_6, %c0_7] : memref<1x1x10x15x8xf32, #tpu.memory_space<vmem>>, vector<1x1x1x15x8xf32>
      %7 = vector.shape_cast %6 : vector<1x1x1x15x8xf32> to vector<15x8xf32>
      %8 = vector.extract_strided_slice %7 {offsets = [0, 0], sizes = [11, 4], strides = [1, 1]} : vector<15x8xf32> to vector<11x4xf32>
      %9 = arith.truncf %8 : vector<11x4xf32> to vector<11x4xbf16>
      %c0_8 = arith.constant 0 : index
      %c0_9 = arith.constant 0 : index
      %c0_10 = arith.constant 0 : index
      %c0_11 = arith.constant 0 : index
      %10 = vector.load %arg3[%c0_8, %c0_9, %c0_10, %c0_11] : memref<1x27x4x8xbf16, #tpu.memory_space<vmem>>, vector<1x1x4x8xbf16>
      %11 = vector.shape_cast %10 : vector<1x1x4x8xbf16> to vector<4x8xbf16>
      %cst_12 = arith.constant dense<0.000000e+00> : vector<11x8xf32>
      %12 = tpu.matmul %9, %11, %cst_12 {dimension_numbers = #tpu.dot_dimension_numbers<[1], [0], [0], [1], [0, 0, 1, 1], [], []>} : vector<11x4xbf16>, vector<4x8xbf16>, vector<11x8xf32> -> vector<11x8xf32>
      %13 = arith.addf %3, %12 : vector<11x8xf32>
      %14 = vector.extract_strided_slice %7 {offsets = [0, 4], sizes = [11, 4], strides = [1, 1]} : vector<15x8xf32> to vector<11x4xf32>
      %15 = arith.truncf %14 : vector<11x4xf32> to vector<11x4xbf16>
      %c0_13 = arith.constant 0 : index
      %c1 = arith.constant 1 : index
      %c0_14 = arith.constant 0 : index
      %c0_15 = arith.constant 0 : index
      %16 = vector.load %arg3[%c0_13, %c1, %c0_14, %c0_15] : memref<1x27x4x8xbf16, #tpu.memory_space<vmem>>, vector<1x1x4x8xbf16>
      %17 = vector.shape_cast %16 : vector<1x1x4x8xbf16> to vector<4x8xbf16>
      %cst_16 = arith.constant dense<0.000000e+00> : vector<11x8xf32>
      %18 = tpu.matmul %15, %17, %cst_16 {dimension_numbers = #tpu.dot_dimension_numbers<[1], [0], [0], [1], [0, 0, 1, 1], [], []>} : vector<11x4xbf16>, vector<4x8xbf16>, vector<11x8xf32> -> vector<11x8xf32>
      %19 = arith.addf %13, %18 : vector<11x8xf32>
      %20 = vector.extract_strided_slice %7 {offsets = [1, 0], sizes = [11, 4], strides = [1, 1]} : vector<15x8xf32> to vector<11x4xf32>
      %21 = arith.truncf %20 : vector<11x4xf32> to vector<11x4xbf16>
      %c0_17 = arith.constant 0 : index
      %c2 = arith.constant 2 : index
      %c0_18 = arith.constant 0 : index
      %c0_19 = arith.constant 0 : index
      %22 = vector.load %arg3[%c0_17, %c2, %c0_18, %c0_19] : memref<1x27x4x8xbf16, #tpu.memory_space<vmem>>, vector<1x1x4x8xbf16>
      %23 = vector.shape_cast %22 : vector<1x1x4x8xbf16> to vector<4x8xbf16>
      %cst_20 = arith.constant dense<0.000000e+00> : vector<11x8xf32>
      %24 = tpu.matmul %21, %23, %cst_20 {dimension_numbers = #tpu.dot_dimension_numbers<[1], [0], [0], [1], [0, 0, 1, 1], [], []>} : vector<11x4xbf16>, vector<4x8xbf16>, vector<11x8xf32> -> vector<11x8xf32>
      %25 = arith.addf %19, %24 : vector<11x8xf32>
      %26 = vector.extract_strided_slice %7 {offsets = [1, 4], sizes = [11, 4], strides = [1, 1]} : vector<15x8xf32> to vector<11x4xf32>
      %27 = arith.truncf %26 : vector<11x4xf32> to vector<11x4xbf16>
      %c0_21 = arith.constant 0 : index
      %c3 = arith.constant 3 : index
      %c0_22 = arith.constant 0 : index
      %c0_23 = arith.constant 0 : index
      %28 = vector.load %arg3[%c0_21, %c3, %c0_22, %c0_23] : memref<1x27x4x8xbf16, #tpu.memory_space<vmem>>, vector<1x1x4x8xbf16>
      %29 = vector.shape_cast %28 : vector<1x1x4x8xbf16> to vector<4x8xbf16>
      %cst_24 = arith.constant dense<0.000000e+00> : vector<11x8xf32>
      %30 = tpu.matmul %27, %29, %cst_24 {dimension_numbers = #tpu.dot_dimension_numbers<[1], [0], [0], [1], [0, 0, 1, 1], [], []>} : vector<11x4xbf16>, vector<4x8xbf16>, vector<11x8xf32> -> vector<11x8xf32>
      %31 = arith.addf %25, %30 : vector<11x8xf32>
      %32 = vector.extract_strided_slice %7 {offsets = [2, 0], sizes = [11, 4], strides = [1, 1]} : vector<15x8xf32> to vector<11x4xf32>
      %33 = arith.truncf %32 : vector<11x4xf32> to vector<11x4xbf16>
      %c0_25 = arith.constant 0 : index
      %c4 = arith.constant 4 : index
      %c0_26 = arith.constant 0 : index
      %c0_27 = arith.constant 0 : index
      %34 = vector.load %arg3[%c0_25, %c4, %c0_26, %c0_27] : memref<1x27x4x8xbf16, #tpu.memory_space<vmem>>, vector<1x1x4x8xbf16>
      %35 = vector.shape_cast %34 : vector<1x1x4x8xbf16> to vector<4x8xbf16>
      %cst_28 = arith.constant dense<0.000000e+00> : vector<11x8xf32>
      %36 = tpu.matmul %33, %35, %cst_28 {dimension_numbers = #tpu.dot_dimension_numbers<[1], [0], [0], [1], [0, 0, 1, 1], [], []>} : vector<11x4xbf16>, vector<4x8xbf16>, vector<11x8xf32> -> vector<11x8xf32>
      %37 = arith.addf %31, %36 : vector<11x8xf32>
      %38 = vector.extract_strided_slice %7 {offsets = [2, 4], sizes = [11, 4], strides = [1, 1]} : vector<15x8xf32> to vector<11x4xf32>
      %39 = arith.truncf %38 : vector<11x4xf32> to vector<11x4xbf16>
      %c0_29 = arith.constant 0 : index
      %c5 = arith.constant 5 : index
      %c0_30 = arith.constant 0 : index
      %c0_31 = arith.constant 0 : index
      %40 = vector.load %arg3[%c0_29, %c5, %c0_30, %c0_31] : memref<1x27x4x8xbf16, #tpu.memory_space<vmem>>, vector<1x1x4x8xbf16>
      %41 = vector.shape_cast %40 : vector<1x1x4x8xbf16> to vector<4x8xbf16>
      %cst_32 = arith.constant dense<0.000000e+00> : vector<11x8xf32>
      %42 = tpu.matmul %39, %41, %cst_32 {dimension_numbers = #tpu.dot_dimension_numbers<[1], [0], [0], [1], [0, 0, 1, 1], [], []>} : vector<11x4xbf16>, vector<4x8xbf16>, vector<11x8xf32> -> vector<11x8xf32>
      %43 = arith.addf %37, %42 : vector<11x8xf32>
      %44 = vector.extract_strided_slice %7 {offsets = [3, 0], sizes = [11, 4], strides = [1, 1]} : vector<15x8xf32> to vector<11x4xf32>
      %45 = arith.truncf %44 : vector<11x4xf32> to vector<11x4xbf16>
      %c0_33 = arith.constant 0 : index
      %c6 = arith.constant 6 : index
      %c0_34 = arith.constant 0 : index
      %c0_35 = arith.constant 0 : index
      %46 = vector.load %arg3[%c0_33, %c6, %c0_34, %c0_35] : memref<1x27x4x8xbf16, #tpu.memory_space<vmem>>, vector<1x1x4x8xbf16>
      %47 = vector.shape_cast %46 : vector<1x1x4x8xbf16> to vector<4x8xbf16>
      %cst_36 = arith.constant dense<0.000000e+00> : vector<11x8xf32>
      %48 = tpu.matmul %45, %47, %cst_36 {dimension_numbers = #tpu.dot_dimension_numbers<[1], [0], [0], [1], [0, 0, 1, 1], [], []>} : vector<11x4xbf16>, vector<4x8xbf16>, vector<11x8xf32> -> vector<11x8xf32>
      %49 = arith.addf %43, %48 : vector<11x8xf32>
      %50 = vector.extract_strided_slice %7 {offsets = [3, 4], sizes = [11, 4], strides = [1, 1]} : vector<15x8xf32> to vector<11x4xf32>
      %51 = arith.truncf %50 : vector<11x4xf32> to vector<11x4xbf16>
      %c0_37 = arith.constant 0 : index
      %c7 = arith.constant 7 : index
      %c0_38 = arith.constant 0 : index
      %c0_39 = arith.constant 0 : index
      %52 = vector.load %arg3[%c0_37, %c7, %c0_38, %c0_39] : memref<1x27x4x8xbf16, #tpu.memory_space<vmem>>, vector<1x1x4x8xbf16>
      %53 = vector.shape_cast %52 : vector<1x1x4x8xbf16> to vector<4x8xbf16>
      %cst_40 = arith.constant dense<0.000000e+00> : vector<11x8xf32>
      %54 = tpu.matmul %51, %53, %cst_40 {dimension_numbers = #tpu.dot_dimension_numbers<[1], [0], [0], [1], [0, 0, 1, 1], [], []>} : vector<11x4xbf16>, vector<4x8xbf16>, vector<11x8xf32> -> vector<11x8xf32>
      %55 = arith.addf %49, %54 : vector<11x8xf32>
      %56 = vector.extract_strided_slice %7 {offsets = [4, 0], sizes = [11, 4], strides = [1, 1]} : vector<15x8xf32> to vector<11x4xf32>
      %57 = arith.truncf %56 : vector<11x4xf32> to vector<11x4xbf16>
      %c0_41 = arith.constant 0 : index
      %c8 = arith.constant 8 : index
      %c0_42 = arith.constant 0 : index
      %c0_43 = arith.constant 0 : index
      %58 = vector.load %arg3[%c0_41, %c8, %c0_42, %c0_43] : memref<1x27x4x8xbf16, #tpu.memory_space<vmem>>, vector<1x1x4x8xbf16>
      %59 = vector.shape_cast %58 : vector<1x1x4x8xbf16> to vector<4x8xbf16>
      %cst_44 = arith.constant dense<0.000000e+00> : vector<11x8xf32>
      %60 = tpu.matmul %57, %59, %cst_44 {dimension_numbers = #tpu.dot_dimension_numbers<[1], [0], [0], [1], [0, 0, 1, 1], [], []>} : vector<11x4xbf16>, vector<4x8xbf16>, vector<11x8xf32> -> vector<11x8xf32>
      %61 = arith.addf %55, %60 : vector<11x8xf32>
      %c2_i32 = arith.constant 2 : i32
      %62 = arith.addi %arg6, %c2_i32 : i32
      %c0_45 = arith.constant 0 : index
      %c0_46 = arith.constant 0 : index
      %63 = arith.index_cast %62 : i32 to index
      %c0_47 = arith.constant 0 : index
      %c0_48 = arith.constant 0 : index
      %64 = vector.load %arg2[%c0_45, %c0_46, %63, %c0_47, %c0_48] : memref<1x1x10x15x8xf32, #tpu.memory_space<vmem>>, vector<1x1x1x15x8xf32>
      %65 = vector.shape_cast %64 : vector<1x1x1x15x8xf32> to vector<15x8xf32>
      %66 = vector.extract_strided_slice %65 {offsets = [0, 0], sizes = [11, 4], strides = [1, 1]} : vector<15x8xf32> to vector<11x4xf32>
      %67 = arith.truncf %66 : vector<11x4xf32> to vector<11x4xbf16>
      %c0_49 = arith.constant 0 : index
      %c9 = arith.constant 9 : index
      %c0_50 = arith.constant 0 : index
      %c0_51 = arith.constant 0 : index
      %68 = vector.load %arg3[%c0_49, %c9, %c0_50, %c0_51] : memref<1x27x4x8xbf16, #tpu.memory_space<vmem>>, vector<1x1x4x8xbf16>
      %69 = vector.shape_cast %68 : vector<1x1x4x8xbf16> to vector<4x8xbf16>
      %cst_52 = arith.constant dense<0.000000e+00> : vector<11x8xf32>
      %70 = tpu.matmul %67, %69, %cst_52 {dimension_numbers = #tpu.dot_dimension_numbers<[1], [0], [0], [1], [0, 0, 1, 1], [], []>} : vector<11x4xbf16>, vector<4x8xbf16>, vector<11x8xf32> -> vector<11x8xf32>
      %71 = arith.addf %61, %70 : vector<11x8xf32>
      %72 = vector.extract_strided_slice %65 {offsets = [0, 4], sizes = [11, 4], strides = [1, 1]} : vector<15x8xf32> to vector<11x4xf32>
      %73 = arith.truncf %72 : vector<11x4xf32> to vector<11x4xbf16>
      %c0_53 = arith.constant 0 : index
      %c10 = arith.constant 10 : index
      %c0_54 = arith.constant 0 : index
      %c0_55 = arith.constant 0 : index
      %74 = vector.load %arg3[%c0_53, %c10, %c0_54, %c0_55] : memref<1x27x4x8xbf16, #tpu.memory_space<vmem>>, vector<1x1x4x8xbf16>
      %75 = vector.shape_cast %74 : vector<1x1x4x8xbf16> to vector<4x8xbf16>
      %cst_56 = arith.constant dense<0.000000e+00> : vector<11x8xf32>
      %76 = tpu.matmul %73, %75, %cst_56 {dimension_numbers = #tpu.dot_dimension_numbers<[1], [0], [0], [1], [0, 0, 1, 1], [], []>} : vector<11x4xbf16>, vector<4x8xbf16>, vector<11x8xf32> -> vector<11x8xf32>
      %77 = arith.addf %71, %76 : vector<11x8xf32>
      %78 = vector.extract_strided_slice %65 {offsets = [1, 0], sizes = [11, 4], strides = [1, 1]} : vector<15x8xf32> to vector<11x4xf32>
      %79 = arith.truncf %78 : vector<11x4xf32> to vector<11x4xbf16>
      %c0_57 = arith.constant 0 : index
      %c11 = arith.constant 11 : index
      %c0_58 = arith.constant 0 : index
      %c0_59 = arith.constant 0 : index
      %80 = vector.load %arg3[%c0_57, %c11, %c0_58, %c0_59] : memref<1x27x4x8xbf16, #tpu.memory_space<vmem>>, vector<1x1x4x8xbf16>
      %81 = vector.shape_cast %80 : vector<1x1x4x8xbf16> to vector<4x8xbf16>
      %cst_60 = arith.constant dense<0.000000e+00> : vector<11x8xf32>
      %82 = tpu.matmul %79, %81, %cst_60 {dimension_numbers = #tpu.dot_dimension_numbers<[1], [0], [0], [1], [0, 0, 1, 1], [], []>} : vector<11x4xbf16>, vector<4x8xbf16>, vector<11x8xf32> -> vector<11x8xf32>
      %83 = arith.addf %77, %82 : vector<11x8xf32>
      %84 = vector.extract_strided_slice %65 {offsets = [1, 4], sizes = [11, 4], strides = [1, 1]} : vector<15x8xf32> to vector<11x4xf32>
      %85 = arith.truncf %84 : vector<11x4xf32> to vector<11x4xbf16>
      %c0_61 = arith.constant 0 : index
      %c12 = arith.constant 12 : index
      %c0_62 = arith.constant 0 : index
      %c0_63 = arith.constant 0 : index
      %86 = vector.load %arg3[%c0_61, %c12, %c0_62, %c0_63] : memref<1x27x4x8xbf16, #tpu.memory_space<vmem>>, vector<1x1x4x8xbf16>
      %87 = vector.shape_cast %86 : vector<1x1x4x8xbf16> to vector<4x8xbf16>
      %cst_64 = arith.constant dense<0.000000e+00> : vector<11x8xf32>
      %88 = tpu.matmul %85, %87, %cst_64 {dimension_numbers = #tpu.dot_dimension_numbers<[1], [0], [0], [1], [0, 0, 1, 1], [], []>} : vector<11x4xbf16>, vector<4x8xbf16>, vector<11x8xf32> -> vector<11x8xf32>
      %89 = arith.addf %83, %88 : vector<11x8xf32>
      %90 = vector.extract_strided_slice %65 {offsets = [2, 0], sizes = [11, 4], strides = [1, 1]} : vector<15x8xf32> to vector<11x4xf32>
      %91 = arith.truncf %90 : vector<11x4xf32> to vector<11x4xbf16>
      %c0_65 = arith.constant 0 : index
      %c13 = arith.constant 13 : index
      %c0_66 = arith.constant 0 : index
      %c0_67 = arith.constant 0 : index
      %92 = vector.load %arg3[%c0_65, %c13, %c0_66, %c0_67] : memref<1x27x4x8xbf16, #tpu.memory_space<vmem>>, vector<1x1x4x8xbf16>
      %93 = vector.shape_cast %92 : vector<1x1x4x8xbf16> to vector<4x8xbf16>
      %cst_68 = arith.constant dense<0.000000e+00> : vector<11x8xf32>
      %94 = tpu.matmul %91, %93, %cst_68 {dimension_numbers = #tpu.dot_dimension_numbers<[1], [0], [0], [1], [0, 0, 1, 1], [], []>} : vector<11x4xbf16>, vector<4x8xbf16>, vector<11x8xf32> -> vector<11x8xf32>
      %95 = arith.addf %89, %94 : vector<11x8xf32>
      %96 = vector.extract_strided_slice %65 {offsets = [2, 4], sizes = [11, 4], strides = [1, 1]} : vector<15x8xf32> to vector<11x4xf32>
      %97 = arith.truncf %96 : vector<11x4xf32> to vector<11x4xbf16>
      %c0_69 = arith.constant 0 : index
      %c14 = arith.constant 14 : index
      %c0_70 = arith.constant 0 : index
      %c0_71 = arith.constant 0 : index
      %98 = vector.load %arg3[%c0_69, %c14, %c0_70, %c0_71] : memref<1x27x4x8xbf16, #tpu.memory_space<vmem>>, vector<1x1x4x8xbf16>
      %99 = vector.shape_cast %98 : vector<1x1x4x8xbf16> to vector<4x8xbf16>
      %cst_72 = arith.constant dense<0.000000e+00> : vector<11x8xf32>
      %100 = tpu.matmul %97, %99, %cst_72 {dimension_numbers = #tpu.dot_dimension_numbers<[1], [0], [0], [1], [0, 0, 1, 1], [], []>} : vector<11x4xbf16>, vector<4x8xbf16>, vector<11x8xf32> -> vector<11x8xf32>
      %101 = arith.addf %95, %100 : vector<11x8xf32>
      %102 = vector.extract_strided_slice %65 {offsets = [3, 0], sizes = [11, 4], strides = [1, 1]} : vector<15x8xf32> to vector<11x4xf32>
      %103 = arith.truncf %102 : vector<11x4xf32> to vector<11x4xbf16>
      %c0_73 = arith.constant 0 : index
      %c15 = arith.constant 15 : index
      %c0_74 = arith.constant 0 : index
      %c0_75 = arith.constant 0 : index
      %104 = vector.load %arg3[%c0_73, %c15, %c0_74, %c0_75] : memref<1x27x4x8xbf16, #tpu.memory_space<vmem>>, vector<1x1x4x8xbf16>
      %105 = vector.shape_cast %104 : vector<1x1x4x8xbf16> to vector<4x8xbf16>
      %cst_76 = arith.constant dense<0.000000e+00> : vector<11x8xf32>
      %106 = tpu.matmul %103, %105, %cst_76 {dimension_numbers = #tpu.dot_dimension_numbers<[1], [0], [0], [1], [0, 0, 1, 1], [], []>} : vector<11x4xbf16>, vector<4x8xbf16>, vector<11x8xf32> -> vector<11x8xf32>
      %107 = arith.addf %101, %106 : vector<11x8xf32>
      %108 = vector.extract_strided_slice %65 {offsets = [3, 4], sizes = [11, 4], strides = [1, 1]} : vector<15x8xf32> to vector<11x4xf32>
      %109 = arith.truncf %108 : vector<11x4xf32> to vector<11x4xbf16>
      %c0_77 = arith.constant 0 : index
      %c16 = arith.constant 16 : index
      %c0_78 = arith.constant 0 : index
      %c0_79 = arith.constant 0 : index
      %110 = vector.load %arg3[%c0_77, %c16, %c0_78, %c0_79] : memref<1x27x4x8xbf16, #tpu.memory_space<vmem>>, vector<1x1x4x8xbf16>
      %111 = vector.shape_cast %110 : vector<1x1x4x8xbf16> to vector<4x8xbf16>
      %cst_80 = arith.constant dense<0.000000e+00> : vector<11x8xf32>
      %112 = tpu.matmul %109, %111, %cst_80 {dimension_numbers = #tpu.dot_dimension_numbers<[1], [0], [0], [1], [0, 0, 1, 1], [], []>} : vector<11x4xbf16>, vector<4x8xbf16>, vector<11x8xf32> -> vector<11x8xf32>
      %113 = arith.addf %107, %112 : vector<11x8xf32>
      %114 = vector.extract_strided_slice %65 {offsets = [4, 0], sizes = [11, 4], strides = [1, 1]} : vector<15x8xf32> to vector<11x4xf32>
      %115 = arith.truncf %114 : vector<11x4xf32> to vector<11x4xbf16>
      %c0_81 = arith.constant 0 : index
      %c17 = arith.constant 17 : index
      %c0_82 = arith.constant 0 : index
      %c0_83 = arith.constant 0 : index
      %116 = vector.load %arg3[%c0_81, %c17, %c0_82, %c0_83] : memref<1x27x4x8xbf16, #tpu.memory_space<vmem>>, vector<1x1x4x8xbf16>
      %117 = vector.shape_cast %116 : vector<1x1x4x8xbf16> to vector<4x8xbf16>
      %cst_84 = arith.constant dense<0.000000e+00> : vector<11x8xf32>
      %118 = tpu.matmul %115, %117, %cst_84 {dimension_numbers = #tpu.dot_dimension_numbers<[1], [0], [0], [1], [0, 0, 1, 1], [], []>} : vector<11x4xbf16>, vector<4x8xbf16>, vector<11x8xf32> -> vector<11x8xf32>
      %119 = arith.addf %113, %118 : vector<11x8xf32>
      %c4_i32 = arith.constant 4 : i32
      %120 = arith.addi %arg6, %c4_i32 : i32
      %c0_85 = arith.constant 0 : index
      %c0_86 = arith.constant 0 : index
      %121 = arith.index_cast %120 : i32 to index
      %c0_87 = arith.constant 0 : index
      %c0_88 = arith.constant 0 : index
      %122 = vector.load %arg2[%c0_85, %c0_86, %121, %c0_87, %c0_88] : memref<1x1x10x15x8xf32, #tpu.memory_space<vmem>>, vector<1x1x1x15x8xf32>
      %123 = vector.shape_cast %122 : vector<1x1x1x15x8xf32> to vector<15x8xf32>
      %124 = vector.extract_strided_slice %123 {offsets = [0, 0], sizes = [11, 4], strides = [1, 1]} : vector<15x8xf32> to vector<11x4xf32>
      %125 = arith.truncf %124 : vector<11x4xf32> to vector<11x4xbf16>
      %c0_89 = arith.constant 0 : index
      %c18 = arith.constant 18 : index
      %c0_90 = arith.constant 0 : index
      %c0_91 = arith.constant 0 : index
      %126 = vector.load %arg3[%c0_89, %c18, %c0_90, %c0_91] : memref<1x27x4x8xbf16, #tpu.memory_space<vmem>>, vector<1x1x4x8xbf16>
      %127 = vector.shape_cast %126 : vector<1x1x4x8xbf16> to vector<4x8xbf16>
      %cst_92 = arith.constant dense<0.000000e+00> : vector<11x8xf32>
      %128 = tpu.matmul %125, %127, %cst_92 {dimension_numbers = #tpu.dot_dimension_numbers<[1], [0], [0], [1], [0, 0, 1, 1], [], []>} : vector<11x4xbf16>, vector<4x8xbf16>, vector<11x8xf32> -> vector<11x8xf32>
      %129 = arith.addf %119, %128 : vector<11x8xf32>
      %130 = vector.extract_strided_slice %123 {offsets = [0, 4], sizes = [11, 4], strides = [1, 1]} : vector<15x8xf32> to vector<11x4xf32>
      %131 = arith.truncf %130 : vector<11x4xf32> to vector<11x4xbf16>
      %c0_93 = arith.constant 0 : index
      %c19 = arith.constant 19 : index
      %c0_94 = arith.constant 0 : index
      %c0_95 = arith.constant 0 : index
      %132 = vector.load %arg3[%c0_93, %c19, %c0_94, %c0_95] : memref<1x27x4x8xbf16, #tpu.memory_space<vmem>>, vector<1x1x4x8xbf16>
      %133 = vector.shape_cast %132 : vector<1x1x4x8xbf16> to vector<4x8xbf16>
      %cst_96 = arith.constant dense<0.000000e+00> : vector<11x8xf32>
      %134 = tpu.matmul %131, %133, %cst_96 {dimension_numbers = #tpu.dot_dimension_numbers<[1], [0], [0], [1], [0, 0, 1, 1], [], []>} : vector<11x4xbf16>, vector<4x8xbf16>, vector<11x8xf32> -> vector<11x8xf32>
      %135 = arith.addf %129, %134 : vector<11x8xf32>
      %136 = vector.extract_strided_slice %123 {offsets = [1, 0], sizes = [11, 4], strides = [1, 1]} : vector<15x8xf32> to vector<11x4xf32>
      %137 = arith.truncf %136 : vector<11x4xf32> to vector<11x4xbf16>
      %c0_97 = arith.constant 0 : index
      %c20 = arith.constant 20 : index
      %c0_98 = arith.constant 0 : index
      %c0_99 = arith.constant 0 : index
      %138 = vector.load %arg3[%c0_97, %c20, %c0_98, %c0_99] : memref<1x27x4x8xbf16, #tpu.memory_space<vmem>>, vector<1x1x4x8xbf16>
      %139 = vector.shape_cast %138 : vector<1x1x4x8xbf16> to vector<4x8xbf16>
      %cst_100 = arith.constant dense<0.000000e+00> : vector<11x8xf32>
      %140 = tpu.matmul %137, %139, %cst_100 {dimension_numbers = #tpu.dot_dimension_numbers<[1], [0], [0], [1], [0, 0, 1, 1], [], []>} : vector<11x4xbf16>, vector<4x8xbf16>, vector<11x8xf32> -> vector<11x8xf32>
      %141 = arith.addf %135, %140 : vector<11x8xf32>
      %142 = vector.extract_strided_slice %123 {offsets = [1, 4], sizes = [11, 4], strides = [1, 1]} : vector<15x8xf32> to vector<11x4xf32>
      %143 = arith.truncf %142 : vector<11x4xf32> to vector<11x4xbf16>
      %c0_101 = arith.constant 0 : index
      %c21 = arith.constant 21 : index
      %c0_102 = arith.constant 0 : index
      %c0_103 = arith.constant 0 : index
      %144 = vector.load %arg3[%c0_101, %c21, %c0_102, %c0_103] : memref<1x27x4x8xbf16, #tpu.memory_space<vmem>>, vector<1x1x4x8xbf16>
      %145 = vector.shape_cast %144 : vector<1x1x4x8xbf16> to vector<4x8xbf16>
      %cst_104 = arith.constant dense<0.000000e+00> : vector<11x8xf32>
      %146 = tpu.matmul %143, %145, %cst_104 {dimension_numbers = #tpu.dot_dimension_numbers<[1], [0], [0], [1], [0, 0, 1, 1], [], []>} : vector<11x4xbf16>, vector<4x8xbf16>, vector<11x8xf32> -> vector<11x8xf32>
      %147 = arith.addf %141, %146 : vector<11x8xf32>
      %148 = vector.extract_strided_slice %123 {offsets = [2, 0], sizes = [11, 4], strides = [1, 1]} : vector<15x8xf32> to vector<11x4xf32>
      %149 = arith.truncf %148 : vector<11x4xf32> to vector<11x4xbf16>
      %c0_105 = arith.constant 0 : index
      %c22 = arith.constant 22 : index
      %c0_106 = arith.constant 0 : index
      %c0_107 = arith.constant 0 : index
      %150 = vector.load %arg3[%c0_105, %c22, %c0_106, %c0_107] : memref<1x27x4x8xbf16, #tpu.memory_space<vmem>>, vector<1x1x4x8xbf16>
      %151 = vector.shape_cast %150 : vector<1x1x4x8xbf16> to vector<4x8xbf16>
      %cst_108 = arith.constant dense<0.000000e+00> : vector<11x8xf32>
      %152 = tpu.matmul %149, %151, %cst_108 {dimension_numbers = #tpu.dot_dimension_numbers<[1], [0], [0], [1], [0, 0, 1, 1], [], []>} : vector<11x4xbf16>, vector<4x8xbf16>, vector<11x8xf32> -> vector<11x8xf32>
      %153 = arith.addf %147, %152 : vector<11x8xf32>
      %154 = vector.extract_strided_slice %123 {offsets = [2, 4], sizes = [11, 4], strides = [1, 1]} : vector<15x8xf32> to vector<11x4xf32>
      %155 = arith.truncf %154 : vector<11x4xf32> to vector<11x4xbf16>
      %c0_109 = arith.constant 0 : index
      %c23 = arith.constant 23 : index
      %c0_110 = arith.constant 0 : index
      %c0_111 = arith.constant 0 : index
      %156 = vector.load %arg3[%c0_109, %c23, %c0_110, %c0_111] : memref<1x27x4x8xbf16, #tpu.memory_space<vmem>>, vector<1x1x4x8xbf16>
      %157 = vector.shape_cast %156 : vector<1x1x4x8xbf16> to vector<4x8xbf16>
      %cst_112 = arith.constant dense<0.000000e+00> : vector<11x8xf32>
      %158 = tpu.matmul %155, %157, %cst_112 {dimension_numbers = #tpu.dot_dimension_numbers<[1], [0], [0], [1], [0, 0, 1, 1], [], []>} : vector<11x4xbf16>, vector<4x8xbf16>, vector<11x8xf32> -> vector<11x8xf32>
      %159 = arith.addf %153, %158 : vector<11x8xf32>
      %160 = vector.extract_strided_slice %123 {offsets = [3, 0], sizes = [11, 4], strides = [1, 1]} : vector<15x8xf32> to vector<11x4xf32>
      %161 = arith.truncf %160 : vector<11x4xf32> to vector<11x4xbf16>
      %c0_113 = arith.constant 0 : index
      %c24 = arith.constant 24 : index
      %c0_114 = arith.constant 0 : index
      %c0_115 = arith.constant 0 : index
      %162 = vector.load %arg3[%c0_113, %c24, %c0_114, %c0_115] : memref<1x27x4x8xbf16, #tpu.memory_space<vmem>>, vector<1x1x4x8xbf16>
      %163 = vector.shape_cast %162 : vector<1x1x4x8xbf16> to vector<4x8xbf16>
      %cst_116 = arith.constant dense<0.000000e+00> : vector<11x8xf32>
      %164 = tpu.matmul %161, %163, %cst_116 {dimension_numbers = #tpu.dot_dimension_numbers<[1], [0], [0], [1], [0, 0, 1, 1], [], []>} : vector<11x4xbf16>, vector<4x8xbf16>, vector<11x8xf32> -> vector<11x8xf32>
      %165 = arith.addf %159, %164 : vector<11x8xf32>
      %166 = vector.extract_strided_slice %123 {offsets = [3, 4], sizes = [11, 4], strides = [1, 1]} : vector<15x8xf32> to vector<11x4xf32>
      %167 = arith.truncf %166 : vector<11x4xf32> to vector<11x4xbf16>
      %c0_117 = arith.constant 0 : index
      %c25 = arith.constant 25 : index
      %c0_118 = arith.constant 0 : index
      %c0_119 = arith.constant 0 : index
      %168 = vector.load %arg3[%c0_117, %c25, %c0_118, %c0_119] : memref<1x27x4x8xbf16, #tpu.memory_space<vmem>>, vector<1x1x4x8xbf16>
      %169 = vector.shape_cast %168 : vector<1x1x4x8xbf16> to vector<4x8xbf16>
      %cst_120 = arith.constant dense<0.000000e+00> : vector<11x8xf32>
      %170 = tpu.matmul %167, %169, %cst_120 {dimension_numbers = #tpu.dot_dimension_numbers<[1], [0], [0], [1], [0, 0, 1, 1], [], []>} : vector<11x4xbf16>, vector<4x8xbf16>, vector<11x8xf32> -> vector<11x8xf32>
      %171 = arith.addf %165, %170 : vector<11x8xf32>
      %172 = vector.extract_strided_slice %123 {offsets = [4, 0], sizes = [11, 4], strides = [1, 1]} : vector<15x8xf32> to vector<11x4xf32>
      %173 = arith.truncf %172 : vector<11x4xf32> to vector<11x4xbf16>
      %c0_121 = arith.constant 0 : index
      %c26 = arith.constant 26 : index
      %c0_122 = arith.constant 0 : index
      %c0_123 = arith.constant 0 : index
      %174 = vector.load %arg3[%c0_121, %c26, %c0_122, %c0_123] : memref<1x27x4x8xbf16, #tpu.memory_space<vmem>>, vector<1x1x4x8xbf16>
      %175 = vector.shape_cast %174 : vector<1x1x4x8xbf16> to vector<4x8xbf16>
      %cst_124 = arith.constant dense<0.000000e+00> : vector<11x8xf32>
      %176 = tpu.matmul %173, %175, %cst_124 {dimension_numbers = #tpu.dot_dimension_numbers<[1], [0], [0], [1], [0, 0, 1, 1], [], []>} : vector<11x4xbf16>, vector<4x8xbf16>, vector<11x8xf32> -> vector<11x8xf32>
      %177 = arith.addf %171, %176 : vector<11x8xf32>
      %178 = vector.broadcast %1 : vector<1x8xf32> to vector<11x8xf32>
      %179 = arith.addf %177, %178 : vector<11x8xf32>
      %cst_125 = arith.constant 0.000000e+00 : f32
      %180 = vector.broadcast %cst_125 : f32 to vector<11x8xf32>
      %181 = arith.cmpf oge, %179, %180 : vector<11x8xf32>
      %cst_126 = arith.constant 1.000000e-01 : f32
      %182 = vector.broadcast %cst_126 : f32 to vector<11x8xf32>
      %183 = arith.mulf %182, %179 : vector<11x8xf32>
      %184 = arith.select %181, %179, %183 : vector<11x8xi1>, vector<11x8xf32>
      %c0_127 = arith.constant 0 : index
      %c0_128 = arith.constant 0 : index
      %185 = arith.index_cast %arg6 : i32 to index
      %c0_129 = arith.constant 0 : index
      %c0_130 = arith.constant 0 : index
      %186 = vector.load %arg5[%c0_127, %c0_128, %185, %c0_129, %c0_130] : memref<1x1x6x11x8xf32, #tpu.memory_space<vmem>>, vector<1x1x1x11x8xf32>
      %187 = vector.shape_cast %186 : vector<1x1x1x11x8xf32> to vector<11x8xf32>
      %188 = vector.shape_cast %184 : vector<11x8xf32> to vector<1x1x1x11x8xf32>
      tpu.vector_store %arg5[%c0_127, %c0_128, %185, %c0_129, %c0_130], %188 {strides = array<i32>} : memref<1x1x6x11x8xf32, #tpu.memory_space<vmem>>, vector<1x1x1x11x8xf32>,
    }
    %c6_i32_2 = arith.constant 6 : i32
    return
  }
  func.func @transform_0(%arg0: i32, %arg1: i32) -> (i32, i32, i32, i32, i32) {
    %c0_i32 = arith.constant 0 : i32
    %c0_i32_0 = arith.constant 0 : i32
    %c0_i32_1 = arith.constant 0 : i32
    %c0_i32_2 = arith.constant 0 : i32
    return %arg0, %arg1, %c0_i32, %c0_i32_0, %c0_i32_1 : i32, i32, i32, i32, i32
  }
  func.func @transform_1(%arg0: i32, %arg1: i32) -> (i32, i32, i32, i32) {
    %c0_i32 = arith.constant 0 : i32
    %c0_i32_0 = arith.constant 0 : i32
    %c0_i32_1 = arith.constant 0 : i32
    %c0_i32_2 = arith.constant 0 : i32
    return %arg0, %c0_i32, %c0_i32_0, %c0_i32_1 : i32, i32, i32, i32
  }
  func.func @transform_2(%arg0: i32, %arg1: i32) -> (i32, i32, i32) {
    %c0_i32 = arith.constant 0 : i32
    %c0_i32_0 = arith.constant 0 : i32
    %c0_i32_1 = arith.constant 0 : i32
    return %arg0, %c0_i32, %c0_i32_0 : i32, i32, i32
  }
  func.func @transform_3(%arg0: i32, %arg1: i32) -> (i32, i32, i32, i32, i32) {
    %c0_i32 = arith.constant 0 : i32
    %c0_i32_0 = arith.constant 0 : i32
    %c0_i32_1 = arith.constant 0 : i32
    %c0_i32_2 = arith.constant 0 : i32
    return %arg0, %arg1, %c0_i32, %c0_i32_0, %c0_i32_1 : i32, i32, i32, i32, i32
  }
}

</mosaic_0001>

<llo_original>
// kernel: tpu_custom_call.1
$region0: #{tpu_custom_call.1}
  #allocation0 [shape = 'u32[]', space=smem, size = 0x4, offset = 0x4, fixed_abs, tag = 'smem constant byte address 0x4 - core index']
  #allocation1 [shape = 'u32[144,128]{1,0:T(1,128)}', space=vmem, size = 0x12000, scoped, tag = 'internal scratch']
  %s0 = inlined_call_operand.vmem [shape: f32[2,2,10,15,8], index: 0, kind: input, shape index: {}]
  %s1 = inlined_call_operand.vmem [shape: bf16[2,27,4,8], index: 1, kind: input, shape index: {}]
  %s2 = inlined_call_operand.vmem [shape: f32[2,1,8], index: 2, kind: input, shape index: {}]
  %s3 = inlined_call_operand.vmem [shape: f32[2,2,6,11,8], index: 3, kind: output, shape index: {}]
  %s4 = sld [smem:[#allocation0]]
  $region52: #{tpu_custom_call.1} parent=0
    _
  %s6 = ssub.s32 1, %s4
  %s7 = scalar_select 0, %s6, %s4
  loop: start=0, step=1, limit=6
  $region2: #{tpu_custom_call.1} parent=0 // loop_pre_header
    _
  $region3: #{tpu_custom_call.1} parent=0 // loop_header
    %s9 = sphi 0, %s13
    %p10 = scmp.ge.s32.totalorder %s9, 6
    %s16 = sphi 0, %s28
    %s17 = sphi 0, %s24
    %s18 = sphi 0, %s16
    %s19 = sphi 0, %s17
    %s20 = sphi 0, %s18
    %s21 = sphi 0, %s19
    %s33 = sphi 0, %s35
    %s36 = sphi 0, %s33
    %s37 = sphi 0, %s36
    %s53 = sphi 0, %s37
    %s59 = sphi 0, %s61
    %s62 = sphi 0, %s59
    %s63 = sphi 0, %s62
    %s79 = sphi 0, %s63
    %s85 = sphi 0, %s87
    %s88 = sphi 0, %s85
    %s89 = sphi 0, %s88
    %s105 = sphi 0, %s89
    %s113 = sphi 0, %s115
    %s116 = sphi 0, %s113
    %s117 = sphi 0, %s116
    %s133 = sphi 0, %s117
  $region4: #{tpu_custom_call.1} parent=0 // loop_header_branch
    %12 = sbr.rel (%p10) target = $region8
  $region5: #{tpu_custom_call.1} parent=0 // loop_body
    %s14 = ssub.s32 %s9, 1
    %s15 = ssub.s32 %s9, 2
    %s22 = sadd.s32 1, %s17
    %p23 = scmp.ge.s32.totalorder %s22, 2
    %s24 = scalar_select %p23, 0, %s22
    %s25 = sadd.s32 1, %s16
    %s26 = scalar_select %p23, %s25, %s16
    %p27 = scmp.ge.s32.totalorder %s26, 2
    %s28 = scalar_select %p27, 0, %s26
    %s29 = ssub.s32 %s16, %s28
    %s30 = ssub.s32 %s17, %s24
    %s31 = sor.u32 %s29, %s30
    %p32 = scmp.eq.s32.totalorder %s31, 0
    %s34 = sadd.s32 %s33, 1
    %s35 = scalar_select %p32, %s33, %s34
    %p38 = pneg %p32
    %p39 = scmp.eq.s32.totalorder %s9, 3
    %p40 = por %p38, %p39
    %p41 = scmp.ne.s32.totalorder %s33, %s36
    %p42 = scmp.eq.s32.totalorder %s9, 0
    %p43 = por %p41, %p42
    %p44 = scmp.ne.s32.totalorder %s33, %s36
    %p45 = scmp.eq.s32.totalorder %s14, 3
    %p46 = por %p44, %p45
    %p47 = scmp.ne.s32.totalorder %s36, %s37
    %p48 = scmp.eq.s32.totalorder %s14, 0
    %p49 = por %p47, %p48
    %p50 = scmp.ne.s32.totalorder %s36, %s37
    %p51 = scmp.eq.s32.totalorder %s15, 3
    %p52 = por %p50, %p51
    %p54 = scmp.ne.s32.totalorder %s37, %s53
    %p55 = scmp.eq.s32.totalorder %s15, 0
    %p56 = por %p54, %p55
    %s57 = ssub.s32 %s16, %s28
    %p58 = scmp.eq.s32.totalorder %s57, 0
    %s60 = sadd.s32 %s59, 1
    %s61 = scalar_select %p58, %s59, %s60
    %p64 = pneg %p58
    %p65 = scmp.eq.s32.totalorder %s9, 3
    %p66 = por %p64, %p65
    %p67 = scmp.ne.s32.totalorder %s59, %s62
    %p68 = scmp.eq.s32.totalorder %s9, 0
    %p69 = por %p67, %p68
    %p70 = scmp.ne.s32.totalorder %s59, %s62
    %p71 = scmp.eq.s32.totalorder %s14, 3
    %p72 = por %p70, %p71
    %p73 = scmp.ne.s32.totalorder %s62, %s63
    %p74 = scmp.eq.s32.totalorder %s14, 0
    %p75 = por %p73, %p74
    %p76 = scmp.ne.s32.totalorder %s62, %s63
    %p77 = scmp.eq.s32.totalorder %s15, 3
    %p78 = por %p76, %p77
    %p80 = scmp.ne.s32.totalorder %s63, %s79
    %p81 = scmp.eq.s32.totalorder %s15, 0
    %p82 = por %p80, %p81
    %s83 = ssub.s32 %s16, %s28
    %p84 = scmp.eq.s32.totalorder %s83, 0
    %s86 = sadd.s32 %s85, 1
    %s87 = scalar_select %p84, %s85, %s86
    %p90 = pneg %p84
    %p91 = scmp.eq.s32.totalorder %s9, 3
    %p92 = por %p90, %p91
    %p93 = scmp.ne.s32.totalorder %s85, %s88
    %p94 = scmp.eq.s32.totalorder %s9, 0
    %p95 = por %p93, %p94
    %p96 = scmp.ne.s32.totalorder %s85, %s88
    %p97 = scmp.eq.s32.totalorder %s14, 3
    %p98 = por %p96, %p97
    %p99 = scmp.ne.s32.totalorder %s88, %s89
    %p100 = scmp.eq.s32.totalorder %s14, 0
    %p101 = por %p99, %p100
    %p102 = scmp.ne.s32.totalorder %s88, %s89
    %p103 = scmp.eq.s32.totalorder %s15, 3
    %p104 = por %p102, %p103
    %p106 = scmp.ne.s32.totalorder %s89, %s105
    %p107 = scmp.eq.s32.totalorder %s15, 0
    %p108 = por %p106, %p107
    %s109 = ssub.s32 %s16, %s28
    %s110 = ssub.s32 %s17, %s24
    %s111 = sor.u32 %s109, %s110
    %p112 = scmp.eq.s32.totalorder %s111, 0
    %s114 = sadd.s32 %s113, 1
    %s115 = scalar_select %p112, %s113, %s114
    %p118 = pneg %p112
    %p119 = scmp.eq.s32.totalorder %s9, 3
    %p120 = por %p118, %p119
    %p121 = scmp.ne.s32.totalorder %s113, %s116
    %p122 = scmp.eq.s32.totalorder %s9, 0
    %p123 = por %p121, %p122
    %p124 = scmp.ne.s32.totalorder %s113, %s116
    %p125 = scmp.eq.s32.totalorder %s14, 3
    %p126 = por %p124, %p125
    %p127 = scmp.ne.s32.totalorder %s116, %s117
    %p128 = scmp.eq.s32.totalorder %s14, 0
    %p129 = por %p127, %p128
    %p130 = scmp.ne.s32.totalorder %s116, %s117
    %p131 = scmp.eq.s32.totalorder %s15, 3
    %p132 = por %p130, %p131
    %p134 = scmp.ne.s32.totalorder %s117, %s133
    %p135 = scmp.eq.s32.totalorder %s15, 0
    %p136 = por %p134, %p135
    %p137 = scmp.le.s32.totalorder 1, %s9
    %p138 = scmp.lt.s32.totalorder %s9, 5
    %p139 = pnand %p137, %p138
    %p140 = pneg %p139
    // Predicated region
    $region9: #{tpu_custom_call.1} parent=5 // pred_check
      _
    $region10: #{tpu_custom_call.1} parent=5 // pred_check_branch
      %142 = sbr.rel (%p139) target = $region12
    $region11: #{tpu_custom_call.1} parent=5 // pred_region
      %s143 = ssub.s32 %s9, 1
    $region12: #{tpu_custom_call.1} parent=5 // pred_fallthru
      _
    %p144 = scmp.lt.s32.totalorder %s9, 4
    // Predicated region
    $region13: #{tpu_custom_call.1} parent=5 // pred_check
      %p145 = pneg %p144
    $region14: #{tpu_custom_call.1} parent=5 // pred_check_branch
      %147 = sbr.rel (%p145) target = $region16
    $region15: #{tpu_custom_call.1} parent=5 // pred_region
      // Predicated region
      $region17: #{tpu_custom_call.1} parent=15 // pred_check
        %p148 = pneg %p43
      $region18: #{tpu_custom_call.1} parent=15 // pred_check_branch
        %150 = sbr.rel (%p148) target = $region20
      $region19: #{tpu_custom_call.1} parent=15 // pred_region
        %p151 = scmp.lt.s32.totalorder %s16, 1
        %s152 = scalar_select %p151, %s16, 1
        %p153 = scmp.lt.s32.totalorder %s17, 1
        %s154 = scalar_select %p153, %s17, 1
        %s155 = smul.addr %s154, 20
        %s156 = smul.addr %s152, 40
        %s157 = sadd.s32 %s155, %s156
        %s158 = smul.addr %s157, 8
        %s159 = scalar_lea.vmem %s0, %s158
      $region20: #{tpu_custom_call.1} parent=15 // pred_fallthru
        _
      // Predicated region
      $region21: #{tpu_custom_call.1} parent=15 // pred_check
        %p160 = pneg %p69
      $region22: #{tpu_custom_call.1} parent=15 // pred_check_branch
        %162 = sbr.rel (%p160) target = $region24
      $region23: #{tpu_custom_call.1} parent=15 // pred_region
        %p163 = scmp.lt.s32.totalorder %s16, 1
        %s164 = scalar_select %p163, %s16, 1
        %s165 = smul.addr %s164, 27
        %s166 = smul.addr %s165, 2
        %s167 = scalar_lea.vmem %s1, %s166
      $region24: #{tpu_custom_call.1} parent=15 // pred_fallthru
        _
      // Predicated region
      $region25: #{tpu_custom_call.1} parent=15 // pred_check
        %p168 = pneg %p95
      $region26: #{tpu_custom_call.1} parent=15 // pred_check_branch
        %170 = sbr.rel (%p168) target = $region28
      $region27: #{tpu_custom_call.1} parent=15 // pred_region
        %p171 = scmp.lt.s32.totalorder %s16, 1
        %s172 = scalar_select %p171, %s16, 1
        %s173 = scalar_lea.vmem %s2, %s172
      $region28: #{tpu_custom_call.1} parent=15 // pred_fallthru
        _
    $region16: #{tpu_custom_call.1} parent=5 // pred_fallthru
      _
    %p174 = scmp.le.s32.totalorder 1, %s9
    %p175 = scmp.lt.s32.totalorder %s9, 5
    %p176 = pnand %p174, %p175
    %p177 = pneg %p176
    // Predicated region
    $region29: #{tpu_custom_call.1} parent=5 // pred_check
      _
    $region30: #{tpu_custom_call.1} parent=5 // pred_check_branch
      %179 = sbr.rel (%p176) target = $region32
    $region31: #{tpu_custom_call.1} parent=5 // pred_region
      %s180 = ssub.s32 %s9, 1
      %p181 = scmp.lt.s32.totalorder %s18, 1
      %s182 = scalar_select %p181, %s18, 1
      %p183 = scmp.lt.s32.totalorder %s19, 1
      %s184 = scalar_select %p183, %s19, 1
      %s185 = smul.addr %s184, 20
      %s186 = smul.addr %s182, 40
      %s187 = sadd.s32 %s185, %s186
      %s188 = smul.addr %s187, 8
      %s189 = scalar_lea.vmem %s0, %s188
      %p190 = pneg %p49
      %p191 = pneg %p46
      %p192 = scmp.lt.s32.totalorder %s18, 1
      %s193 = scalar_select %p192, %s18, 1
      %s194 = smul.addr %s193, 27
      %s195 = smul.addr %s194, 2
      %s196 = scalar_lea.vmem %s1, %s195
      %p197 = pneg %p75
      %p198 = pneg %p72
      %p199 = scmp.lt.s32.totalorder %s18, 1
      %s200 = scalar_select %p199, %s18, 1
      %s201 = scalar_lea.vmem %s2, %s200
      %p202 = pneg %p101
      %p203 = pneg %p98
      %p204 = pneg %p129
      %p205 = pneg %p126
      %p206 = scmp.lt.s32.totalorder %s18, 1
      %s207 = scalar_select %p206, %s18, 1
      %p208 = scmp.lt.s32.totalorder %s19, 1
      %s209 = scalar_select %p208, %s19, 1
      %s210 = smul.addr %s209, 12
      %s211 = smul.addr %s207, 24
      %s212 = sadd.s32 %s210, %s211
      %s213 = smul.addr %s212, 8
      %s214 = scalar_lea.vmem %s3, %s213
      %p215 = scmp.lt.s32.totalorder %s18, 1
      %s216 = scalar_select %p215, %s18, 1
      %p217 = scmp.lt.s32.totalorder %s19, 1
      %s218 = scalar_select %p217, %s19, 1
      %s219 = smul.addr %s218, 20
      %s220 = smul.addr %s216, 40
      %s221 = sadd.s32 %s219, %s220
      %s222 = smul.addr %s221, 8
      %s223 = scalar_lea.vmem %s0, %s222
      %p224 = scmp.lt.s32.totalorder %s18, 1
      %s225 = scalar_select %p224, %s18, 1
      %s226 = smul.addr %s225, 27
      %s227 = smul.addr %s226, 2
      %s228 = scalar_lea.vmem %s1, %s227
      %p229 = scmp.lt.s32.totalorder %s18, 1
      %s230 = scalar_select %p229, %s18, 1
      %s231 = scalar_lea.vmem %s2, %s230
      %p232 = scmp.lt.s32.totalorder %s18, 1
      %s233 = scalar_select %p232, %s18, 1
      %p234 = scmp.lt.s32.totalorder %s19, 1
      %s235 = scalar_select %p234, %s19, 1
      %s236 = smul.addr %s235, 12
      %s237 = smul.addr %s233, 24
      %s238 = sadd.s32 %s236, %s237
      %s239 = smul.addr %s238, 8
      %s240 = scalar_lea.vmem %s3, %s239
      %v242 = vld [vmem:[%s231] sm:$0x1]
      loop: start=0, step=1, limit=6
      $region33: #{tpu_custom_call.1} parent=31 // loop_pre_header
        _
      $region34: #{tpu_custom_call.1} parent=31 // loop_header
        %s244 = sphi 0, %s248
        %p245 = scmp.ge.s32.totalorder %s244, 6
      $region35: #{tpu_custom_call.1} parent=31 // loop_header_branch
        %247 = sbr.rel (%p245) target = $region39
      $region36: #{tpu_custom_call.1} parent=31 // loop_body
        %s249 = smul.u32 %s244, 16
        %s250 = scalar_lea.vmem %s223, %s249
        %v251 = vld [vmem:[%s250] sm:$0xff]
        %v252 = vld [vmem:[%s250 + $0x8] sm:$0x7f]
        %v253 = vpack.c.bf16 %v252, %v251
        %v254 = vld [vmem:[%s228] sm:$0x3]
        %s255 = scalar_lea.vmem %s228, 2
        %v256 = vld [vmem:[%s255] sm:$0x3]
        %258 = vrot.lane.b32.xlu0 %v253, 124
        %v259 = vpop.permute.xlu0 %258
        %vm260 = vcmask 31744
        %v262 = vsel %vm260, %v259, 0
        %vm264 = vcmask 1041408
        %v266 = vsel %vm264, %v256, 0
        %268 = vmatprep.subr.bf16.mxu0 0
        %269 = vmatpush1.bf16.msra.mxu0 %v266
        %270 = vmatprep.subr.bf16.mxu0 0
        %271 = vmatpush1.bf16.msra.mxu0 0
        %272 = vmatprep.subr.bf16.mxu0 0
        %273 = vmatpush1.bf16.msra.mxu0 0
        %274 = vmatprep.subr.bf16.mxu0 0
        %275 = vmatpush1.bf16.msra.mxu0 0
        %276 = vmatprep.subr.bf16.mxu0 0
        %277 = vmatpush1.bf16.msra.mxu0 0
        %278 = vmatprep.subr.bf16.mxu0 0
        %279 = vmatpush1.bf16.msra.mxu0 0
        %280 = vmatprep.subr.bf16.mxu0 0
        %281 = vmatpush1.bf16.msra.mxu0 0
        %282 = vmatprep.subr.bf16.mxu0 0
        %283 = vmatpush1.bf16.msra.mxu0 0
        %284 = vmatprep.subr.bf16.mxu0 0
        %285 = vmatpush1.bf16.msra.mxu0 0
        %286 = vmatprep.subr.bf16.mxu0 0
        %287 = vmatpush1.bf16.msra.mxu0 0
        %288 = vmatprep.subr.bf16.mxu0 0
        %289 = vmatpush1.bf16.msra.mxu0 0
        %290 = vmatprep.subr.bf16.mxu0 0
        %291 = vmatpush1.bf16.msra.mxu0 0
        %292 = vmatprep.subr.bf16.mxu0 0
        %293 = vmatpush1.bf16.msra.mxu0 0
        %294 = vmatprep.subr.bf16.mxu0 0
        %295 = vmatpush1.bf16.msra.mxu0 0
        %296 = vmatprep.subr.bf16.mxu0 0
        %297 = vmatpush1.bf16.msra.mxu0 0
        %298 = vmatprep.subr.bf16.mxu0 0
        %299 = vmatpush1.bf16.msra.mxu0 0
        %300 = vmatprep.mubr.bf16.mxu0 0
        %301 = vmatmul.mubr.bf16.gmra.mrb[0].mxu0 %v262
        %v302 = vpop.f32.mrb[0].mxu0
        %v303 = vadd.f32 0.0, %v302
        %v304 = vpop.f32.mrb[0].mxu0
        %v305 = vpop.f32.mrb[0].mxu0
        %v306 = vadd.f32 0.0, %v305
        %v307 = vpop.f32.mrb[0].mxu0
        %308 = vdwg.mxu0
        %v310 = vsel %vm260, %v253, 0
        %v313 = vsel %vm264, %v254, 0
        %315 = vmatprep.subr.bf16.mxu0 0
        %316 = vmatpush1.bf16.msra.mxu0 %v313
        %317 = vmatprep.subr.bf16.mxu0 0
        %318 = vmatpush1.bf16.msra.mxu0 0
        %319 = vmatprep.subr.bf16.mxu0 0
        %320 = vmatpush1.bf16.msra.mxu0 0
        %321 = vmatprep.subr.bf16.mxu0 0
        %322 = vmatpush1.bf16.msra.mxu0 0
        %323 = vmatprep.subr.bf16.mxu0 0
        %324 = vmatpush1.bf16.msra.mxu0 0
        %325 = vmatprep.subr.bf16.mxu0 0
        %326 = vmatpush1.bf16.msra.mxu0 0
        %327 = vmatprep.subr.bf16.mxu0 0
        %328 = vmatpush1.bf16.msra.mxu0 0
        %329 = vmatprep.subr.bf16.mxu0 0
        %330 = vmatpush1.bf16.msra.mxu0 0
        %331 = vmatprep.subr.bf16.mxu0 0
        %332 = vmatpush1.bf16.msra.mxu0 0
        %333 = vmatprep.subr.bf16.mxu0 0
        %334 = vmatpush1.bf16.msra.mxu0 0
        %335 = vmatprep.subr.bf16.mxu0 0
        %336 = vmatpush1.bf16.msra.mxu0 0
        %337 = vmatprep.subr.bf16.mxu0 0
        %338 = vmatpush1.bf16.msra.mxu0 0
        %339 = vmatprep.subr.bf16.mxu0 0
        %340 = vmatpush1.bf16.msra.mxu0 0
        %341 = vmatprep.subr.bf16.mxu0 0
        %342 = vmatpush1.bf16.msra.mxu0 0
        %343 = vmatprep.subr.bf16.mxu0 0
        %344 = vmatpush1.bf16.msra.mxu0 0
        %345 = vmatprep.subr.bf16.mxu0 0
        %346 = vmatpush1.bf16.msra.mxu0 0
        %347 = vmatprep.mubr.bf16.mxu0 0
        %348 = vmatmul.mubr.bf16.gmra.mrb[0].mxu0 %v310
        %v349 = vpop.f32.mrb[0].mxu0
        %v350 = vadd.f32 %v303, %v349
        %v351 = vpop.f32.mrb[0].mxu0
        %v352 = vpop.f32.mrb[0].mxu0
        %v353 = vadd.f32 %v306, %v352
        %v354 = vpop.f32.mrb[0].mxu0
        %355 = vdwg.mxu0
        %s356 = scalar_lea.vmem %s228, 4
        %v357 = vld [vmem:[%s356] sm:$0x3]
        %v358 = vshrl.u32 %v253, 16
        %v360 = vshll.u32 %v253, 16
        %v362 = vrot.slane %v360, 1
        %v363 = vor.u32 %v358, %v362
        %v365 = vsel %vm260, %v363, 0
        %v368 = vsel %vm264, %v357, 0
        %370 = vmatprep.subr.bf16.mxu0 0
        %371 = vmatpush1.bf16.msra.mxu0 %v368
        %372 = vmatprep.subr.bf16.mxu0 0
        %373 = vmatpush1.bf16.msra.mxu0 0
        %374 = vmatprep.subr.bf16.mxu0 0
        %375 = vmatpush1.bf16.msra.mxu0 0
        %376 = vmatprep.subr.bf16.mxu0 0
        %377 = vmatpush1.bf16.msra.mxu0 0
        %378 = vmatprep.subr.bf16.mxu0 0
        %379 = vmatpush1.bf16.msra.mxu0 0
        %380 = vmatprep.subr.bf16.mxu0 0
        %381 = vmatpush1.bf16.msra.mxu0 0
        %382 = vmatprep.subr.bf16.mxu0 0
        %383 = vmatpush1.bf16.msra.mxu0 0
        %384 = vmatprep.subr.bf16.mxu0 0
        %385 = vmatpush1.bf16.msra.mxu0 0
        %386 = vmatprep.subr.bf16.mxu0 0
        %387 = vmatpush1.bf16.msra.mxu0 0
        %388 = vmatprep.subr.bf16.mxu0 0
        %389 = vmatpush1.bf16.msra.mxu0 0
        %390 = vmatprep.subr.bf16.mxu0 0
        %391 = vmatpush1.bf16.msra.mxu0 0
        %392 = vmatprep.subr.bf16.mxu0 0
        %393 = vmatpush1.bf16.msra.mxu0 0
        %394 = vmatprep.subr.bf16.mxu0 0
        %395 = vmatpush1.bf16.msra.mxu0 0
        %396 = vmatprep.subr.bf16.mxu0 0
        %397 = vmatpush1.bf16.msra.mxu0 0
        %398 = vmatprep.subr.bf16.mxu0 0
        %399 = vmatpush1.bf16.msra.mxu0 0
        %400 = vmatprep.subr.bf16.mxu0 0
        %401 = vmatpush1.bf16.msra.mxu0 0
        %402 = vmatprep.mubr.bf16.mxu0 0
        %403 = vmatmul.mubr.bf16.gmra.mrb[0].mxu0 %v365
        %v404 = vpop.f32.mrb[0].mxu0
        %v405 = vadd.f32 0.0, %v404
        %v406 = vpop.f32.mrb[0].mxu0
        %v407 = vpop.f32.mrb[0].mxu0
        %v408 = vadd.f32 0.0, %v407
        %v409 = vpop.f32.mrb[0].mxu0
        %410 = vdwg.mxu0
        %v411 = vadd.f32 %v350, %v405
        %v412 = vadd.f32 %v353, %v408
        %s413 = scalar_lea.vmem %s228, 6
        %v414 = vld [vmem:[%s413] sm:$0x3]
        %415 = vrot.lane.b32.xlu0 %v363, 124
        %v416 = vpop.permute.xlu0 %415
        %v418 = vsel %vm260, %v416, 0
        %v421 = vsel %vm264, %v414, 0
        %423 = vmatprep.subr.bf16.mxu0 0
        %424 = vmatpush1.bf16.msra.mxu0 %v421
        %425 = vmatprep.subr.bf16.mxu0 0
        %426 = vmatpush1.bf16.msra.mxu0 0
        %427 = vmatprep.subr.bf16.mxu0 0
        %428 = vmatpush1.bf16.msra.mxu0 0
        %429 = vmatprep.subr.bf16.mxu0 0
        %430 = vmatpush1.bf16.msra.mxu0 0
        %431 = vmatprep.subr.bf16.mxu0 0
        %432 = vmatpush1.bf16.msra.mxu0 0
        %433 = vmatprep.subr.bf16.mxu0 0
        %434 = vmatpush1.bf16.msra.mxu0 0
        %435 = vmatprep.subr.bf16.mxu0 0
        %436 = vmatpush1.bf16.msra.mxu0 0
        %437 = vmatprep.subr.bf16.mxu0 0
        %438 = vmatpush1.bf16.msra.mxu0 0
        %439 = vmatprep.subr.bf16.mxu0 0
        %440 = vmatpush1.bf16.msra.mxu0 0
        %441 = vmatprep.subr.bf16.mxu0 0
        %442 = vmatpush1.bf16.msra.mxu0 0
        %443 = vmatprep.subr.bf16.mxu0 0
        %444 = vmatpush1.bf16.msra.mxu0 0
        %445 = vmatprep.subr.bf16.mxu0 0
        %446 = vmatpush1.bf16.msra.mxu0 0
        %447 = vmatprep.subr.bf16.mxu0 0
        %448 = vmatpush1.bf16.msra.mxu0 0
        %449 = vmatprep.subr.bf16.mxu0 0
        %450 = vmatpush1.bf16.msra.mxu0 0
        %451 = vmatprep.subr.bf16.mxu0 0
        %452 = vmatpush1.bf16.msra.mxu0 0
        %453 = vmatprep.subr.bf16.mxu0 0
        %454 = vmatpush1.bf16.msra.mxu0 0
        %455 = vmatprep.mubr.bf16.mxu0 0
        %456 = vmatmul.mubr.bf16.gmra.mrb[0].mxu0 %v418
        %v457 = vpop.f32.mrb[0].mxu0
        %v458 = vadd.f32 0.0, %v457
        %v459 = vpop.f32.mrb[0].mxu0
        %v460 = vpop.f32.mrb[0].mxu0
        %v461 = vadd.f32 0.0, %v460
        %v462 = vpop.f32.mrb[0].mxu0
        %463 = vdwg.mxu0
        %v464 = vadd.f32 %v411, %v458
        %v465 = vadd.f32 %v412, %v461
        %s466 = scalar_lea.vmem %s228, 8
        %v467 = vld [vmem:[%s466] sm:$0x3]
        %v468 = vrot.slane %v253, 1
        %v470 = vsel %vm260, %v468, 0
        %v473 = vsel %vm264, %v467, 0
        %475 = vmatprep.subr.bf16.mxu0 0
        %476 = vmatpush1.bf16.msra.mxu0 %v473
        %477 = vmatprep.subr.bf16.mxu0 0
        %478 = vmatpush1.bf16.msra.mxu0 0
        %479 = vmatprep.subr.bf16.mxu0 0
        %480 = vmatpush1.bf16.msra.mxu0 0
        %481 = vmatprep.subr.bf16.mxu0 0
        %482 = vmatpush1.bf16.msra.mxu0 0
        %483 = vmatprep.subr.bf16.mxu0 0
        %484 = vmatpush1.bf16.msra.mxu0 0
        %485 = vmatprep.subr.bf16.mxu0 0
        %486 = vmatpush1.bf16.msra.mxu0 0
        %487 = vmatprep.subr.bf16.mxu0 0
        %488 = vmatpush1.bf16.msra.mxu0 0
        %489 = vmatprep.subr.bf16.mxu0 0
        %490 = vmatpush1.bf16.msra.mxu0 0
        %491 = vmatprep.subr.bf16.mxu0 0
        %492 = vmatpush1.bf16.msra.mxu0 0
        %493 = vmatprep.subr.bf16.mxu0 0
        %494 = vmatpush1.bf16.msra.mxu0 0
        %495 = vmatprep.subr.bf16.mxu0 0
        %496 = vmatpush1.bf16.msra.mxu0 0
        %497 = vmatprep.subr.bf16.mxu0 0
        %498 = vmatpush1.bf16.msra.mxu0 0
        %499 = vmatprep.subr.bf16.mxu0 0
        %500 = vmatpush1.bf16.msra.mxu0 0
        %501 = vmatprep.subr.bf16.mxu0 0
        %502 = vmatpush1.bf16.msra.mxu0 0
        %503 = vmatprep.subr.bf16.mxu0 0
        %504 = vmatpush1.bf16.msra.mxu0 0
        %505 = vmatprep.subr.bf16.mxu0 0
        %506 = vmatpush1.bf16.msra.mxu0 0
        %507 = vmatprep.mubr.bf16.mxu0 0
        %508 = vmatmul.mubr.bf16.gmra.mrb[0].mxu0 %v470
        %v509 = vpop.f32.mrb[0].mxu0
        %v510 = vadd.f32 0.0, %v509
        %v511 = vpop.f32.mrb[0].mxu0
        %v512 = vpop.f32.mrb[0].mxu0
        %v513 = vadd.f32 0.0, %v512
        %v514 = vpop.f32.mrb[0].mxu0
        %515 = vdwg.mxu0
        %v516 = vadd.f32 %v464, %v510
        %v517 = vadd.f32 %v465, %v513
        %s518 = scalar_lea.vmem %s228, 10
        %v519 = vld [vmem:[%s518] sm:$0x3]
        %520 = vrot.lane.b32.xlu0 %v468, 124
        %v521 = vpop.permute.xlu0 %520
        %v523 = vsel %vm260, %v521, 0
        %v526 = vsel %vm264, %v519, 0
        %528 = vmatprep.subr.bf16.mxu0 0
        %529 = vmatpush1.bf16.msra.mxu0 %v526
        %530 = vmatprep.subr.bf16.mxu0 0
        %531 = vmatpush1.bf16.msra.mxu0 0
        %532 = vmatprep.subr.bf16.mxu0 0
        %533 = vmatpush1.bf16.msra.mxu0 0
        %534 = vmatprep.subr.bf16.mxu0 0
        %535 = vmatpush1.bf16.msra.mxu0 0
        %536 = vmatprep.subr.bf16.mxu0 0
        %537 = vmatpush1.bf16.msra.mxu0 0
        %538 = vmatprep.subr.bf16.mxu0 0
        %539 = vmatpush1.bf16.msra.mxu0 0
        %540 = vmatprep.subr.bf16.mxu0 0
        %541 = vmatpush1.bf16.msra.mxu0 0
        %542 = vmatprep.subr.bf16.mxu0 0
        %543 = vmatpush1.bf16.msra.mxu0 0
        %544 = vmatprep.subr.bf16.mxu0 0
        %545 = vmatpush1.bf16.msra.mxu0 0
        %546 = vmatprep.subr.bf16.mxu0 0
        %547 = vmatpush1.bf16.msra.mxu0 0
        %548 = vmatprep.subr.bf16.mxu0 0
        %549 = vmatpush1.bf16.msra.mxu0 0
        %550 = vmatprep.subr.bf16.mxu0 0
        %551 = vmatpush1.bf16.msra.mxu0 0
        %552 = vmatprep.subr.bf16.mxu0 0
        %553 = vmatpush1.bf16.msra.mxu0 0
        %554 = vmatprep.subr.bf16.mxu0 0
        %555 = vmatpush1.bf16.msra.mxu0 0
        %556 = vmatprep.subr.bf16.mxu0 0
        %557 = vmatpush1.bf16.msra.mxu0 0
        %558 = vmatprep.subr.bf16.mxu0 0
        %559 = vmatpush1.bf16.msra.mxu0 0
        %560 = vmatprep.mubr.bf16.mxu0 0
        %561 = vmatmul.mubr.bf16.gmra.mrb[0].mxu0 %v523
        %v562 = vpop.f32.mrb[0].mxu0
        %v563 = vadd.f32 0.0, %v562
        %v564 = vpop.f32.mrb[0].mxu0
        %v565 = vpop.f32.mrb[0].mxu0
        %v566 = vadd.f32 0.0, %v565
        %v567 = vpop.f32.mrb[0].mxu0
        %568 = vdwg.mxu0
        %v569 = vadd.f32 %v516, %v563
        %v570 = vadd.f32 %v517, %v566
        %s571 = scalar_lea.vmem %s228, 12
        %v572 = vld [vmem:[%s571] sm:$0x3]
        %v573 = vrot.slane %v358, 1
        %v574 = vrot.slane %v360, 2
        %v575 = vor.u32 %v573, %v574
        %v577 = vsel %vm260, %v575, 0
        %v580 = vsel %vm264, %v572, 0
        %582 = vmatprep.subr.bf16.mxu0 0
        %583 = vmatpush1.bf16.msra.mxu0 %v580
        %584 = vmatprep.subr.bf16.mxu0 0
        %585 = vmatpush1.bf16.msra.mxu0 0
        %586 = vmatprep.subr.bf16.mxu0 0
        %587 = vmatpush1.bf16.msra.mxu0 0
        %588 = vmatprep.subr.bf16.mxu0 0
        %589 = vmatpush1.bf16.msra.mxu0 0
        %590 = vmatprep.subr.bf16.mxu0 0
        %591 = vmatpush1.bf16.msra.mxu0 0
        %592 = vmatprep.subr.bf16.mxu0 0
        %593 = vmatpush1.bf16.msra.mxu0 0
        %594 = vmatprep.subr.bf16.mxu0 0
        %595 = vmatpush1.bf16.msra.mxu0 0
        %596 = vmatprep.subr.bf16.mxu0 0
        %597 = vmatpush1.bf16.msra.mxu0 0
        %598 = vmatprep.subr.bf16.mxu0 0
        %599 = vmatpush1.bf16.msra.mxu0 0
        %600 = vmatprep.subr.bf16.mxu0 0
        %601 = vmatpush1.bf16.msra.mxu0 0
        %602 = vmatprep.subr.bf16.mxu0 0
        %603 = vmatpush1.bf16.msra.mxu0 0
        %604 = vmatprep.subr.bf16.mxu0 0
        %605 = vmatpush1.bf16.msra.mxu0 0
        %606 = vmatprep.subr.bf16.mxu0 0
        %607 = vmatpush1.bf16.msra.mxu0 0
        %608 = vmatprep.subr.bf16.mxu0 0
        %609 = vmatpush1.bf16.msra.mxu0 0
        %610 = vmatprep.subr.bf16.mxu0 0
        %611 = vmatpush1.bf16.msra.mxu0 0
        %612 = vmatprep.subr.bf16.mxu0 0
        %613 = vmatpush1.bf16.msra.mxu0 0
        %614 = vmatprep.mubr.bf16.mxu0 0
        %615 = vmatmul.mubr.bf16.gmra.mrb[0].mxu0 %v577
        %v616 = vpop.f32.mrb[0].mxu0
        %v617 = vadd.f32 0.0, %v616
        %v618 = vpop.f32.mrb[0].mxu0
        %v619 = vpop.f32.mrb[0].mxu0
        %v620 = vadd.f32 0.0, %v619
        %v621 = vpop.f32.mrb[0].mxu0
        %622 = vdwg.mxu0
        %v623 = vadd.f32 %v569, %v617
        %v624 = vadd.f32 %v570, %v620
        %s625 = scalar_lea.vmem %s228, 14
        %v626 = vld [vmem:[%s625] sm:$0x3]
        %627 = vrot.lane.b32.xlu0 %v575, 124
        %v628 = vpop.permute.xlu0 %627
        %v630 = vsel %vm260, %v628, 0
        %v633 = vsel %vm264, %v626, 0
        %635 = vmatprep.subr.bf16.mxu0 0
        %636 = vmatpush1.bf16.msra.mxu0 %v633
        %637 = vmatprep.subr.bf16.mxu0 0
        %638 = vmatpush1.bf16.msra.mxu0 0
        %639 = vmatprep.subr.bf16.mxu0 0
        %640 = vmatpush1.bf16.msra.mxu0 0
        %641 = vmatprep.subr.bf16.mxu0 0
        %642 = vmatpush1.bf16.msra.mxu0 0
        %643 = vmatprep.subr.bf16.mxu0 0
        %644 = vmatpush1.bf16.msra.mxu0 0
        %645 = vmatprep.subr.bf16.mxu0 0
        %646 = vmatpush1.bf16.msra.mxu0 0
        %647 = vmatprep.subr.bf16.mxu0 0
        %648 = vmatpush1.bf16.msra.mxu0 0
        %649 = vmatprep.subr.bf16.mxu0 0
        %650 = vmatpush1.bf16.msra.mxu0 0
        %651 = vmatprep.subr.bf16.mxu0 0
        %652 = vmatpush1.bf16.msra.mxu0 0
        %653 = vmatprep.subr.bf16.mxu0 0
        %654 = vmatpush1.bf16.msra.mxu0 0
        %655 = vmatprep.subr.bf16.mxu0 0
        %656 = vmatpush1.bf16.msra.mxu0 0
        %657 = vmatprep.subr.bf16.mxu0 0
        %658 = vmatpush1.bf16.msra.mxu0 0
        %659 = vmatprep.subr.bf16.mxu0 0
        %660 = vmatpush1.bf16.msra.mxu0 0
        %661 = vmatprep.subr.bf16.mxu0 0
        %662 = vmatpush1.bf16.msra.mxu0 0
        %663 = vmatprep.subr.bf16.mxu0 0
        %664 = vmatpush1.bf16.msra.mxu0 0
        %665 = vmatprep.subr.bf16.mxu0 0
        %666 = vmatpush1.bf16.msra.mxu0 0
        %667 = vmatprep.mubr.bf16.mxu0 0
        %668 = vmatmul.mubr.bf16.gmra.mrb[0].mxu0 %v630
        %v669 = vpop.f32.mrb[0].mxu0
        %v670 = vadd.f32 0.0, %v669
        %v671 = vpop.f32.mrb[0].mxu0
        %v672 = vpop.f32.mrb[0].mxu0
        %v673 = vadd.f32 0.0, %v672
        %v674 = vpop.f32.mrb[0].mxu0
        %675 = vdwg.mxu0
        %v676 = vadd.f32 %v623, %v670
        %v677 = vadd.f32 %v624, %v673
        %s678 = scalar_lea.vmem %s228, 16
        %v679 = vld [vmem:[%s678] sm:$0x3]
        %v680 = vrot.slane %v253, 2
        %v682 = vsel %vm260, %v680, 0
        %v685 = vsel %vm264, %v679, 0
        %687 = vmatprep.subr.bf16.mxu0 0
        %688 = vmatpush1.bf16.msra.mxu0 %v685
        %689 = vmatprep.subr.bf16.mxu0 0
        %690 = vmatpush1.bf16.msra.mxu0 0
        %691 = vmatprep.subr.bf16.mxu0 0
        %692 = vmatpush1.bf16.msra.mxu0 0
        %693 = vmatprep.subr.bf16.mxu0 0
        %694 = vmatpush1.bf16.msra.mxu0 0
        %695 = vmatprep.subr.bf16.mxu0 0
        %696 = vmatpush1.bf16.msra.mxu0 0
        %697 = vmatprep.subr.bf16.mxu0 0
        %698 = vmatpush1.bf16.msra.mxu0 0
        %699 = vmatprep.subr.bf16.mxu0 0
        %700 = vmatpush1.bf16.msra.mxu0 0
        %701 = vmatprep.subr.bf16.mxu0 0
        %702 = vmatpush1.bf16.msra.mxu0 0
        %703 = vmatprep.subr.bf16.mxu0 0
        %704 = vmatpush1.bf16.msra.mxu0 0
        %705 = vmatprep.subr.bf16.mxu0 0
        %706 = vmatpush1.bf16.msra.mxu0 0
        %707 = vmatprep.subr.bf16.mxu0 0
        %708 = vmatpush1.bf16.msra.mxu0 0
        %709 = vmatprep.subr.bf16.mxu0 0
        %710 = vmatpush1.bf16.msra.mxu0 0
        %711 = vmatprep.subr.bf16.mxu0 0
        %712 = vmatpush1.bf16.msra.mxu0 0
        %713 = vmatprep.subr.bf16.mxu0 0
        %714 = vmatpush1.bf16.msra.mxu0 0
        %715 = vmatprep.subr.bf16.mxu0 0
        %716 = vmatpush1.bf16.msra.mxu0 0
        %717 = vmatprep.subr.bf16.mxu0 0
        %718 = vmatpush1.bf16.msra.mxu0 0
        %719 = vmatprep.mubr.bf16.mxu0 0
        %720 = vmatmul.mubr.bf16.gmra.mrb[0].mxu0 %v682
        %v721 = vpop.f32.mrb[0].mxu0
        %v722 = vadd.f32 0.0, %v721
        %v723 = vpop.f32.mrb[0].mxu0
        %v724 = vpop.f32.mrb[0].mxu0
        %v725 = vadd.f32 0.0, %v724
        %v726 = vpop.f32.mrb[0].mxu0
        %727 = vdwg.mxu0
        %v728 = vadd.f32 %v676, %v722
        %v729 = vadd.f32 %v677, %v725
        %s730 = sadd.s32 %s244, 2
        %s731 = smul.u32 %s730, 16
        %s732 = scalar_lea.vmem %s223, %s731
        %v733 = vld [vmem:[%s732] sm:$0xff]
        %v734 = vld [vmem:[%s732 + $0x8] sm:$0x7f]
        %v735 = vpack.c.bf16 %v734, %v733
        %s736 = scalar_lea.vmem %s228, 18
        %v737 = vld [vmem:[%s736] sm:$0x3]
        %v739 = vsel %vm260, %v735, 0
        %v742 = vsel %vm264, %v737, 0
        %744 = vmatprep.subr.bf16.mxu0 0
        %745 = vmatpush1.bf16.msra.mxu0 %v742
        %746 = vmatprep.subr.bf16.mxu0 0
        %747 = vmatpush1.bf16.msra.mxu0 0
        %748 = vmatprep.subr.bf16.mxu0 0
        %749 = vmatpush1.bf16.msra.mxu0 0
        %750 = vmatprep.subr.bf16.mxu0 0
        %751 = vmatpush1.bf16.msra.mxu0 0
        %752 = vmatprep.subr.bf16.mxu0 0
        %753 = vmatpush1.bf16.msra.mxu0 0
        %754 = vmatprep.subr.bf16.mxu0 0
        %755 = vmatpush1.bf16.msra.mxu0 0
        %756 = vmatprep.subr.bf16.mxu0 0
        %757 = vmatpush1.bf16.msra.mxu0 0
        %758 = vmatprep.subr.bf16.mxu0 0
        %759 = vmatpush1.bf16.msra.mxu0 0
        %760 = vmatprep.subr.bf16.mxu0 0
        %761 = vmatpush1.bf16.msra.mxu0 0
        %762 = vmatprep.subr.bf16.mxu0 0
        %763 = vmatpush1.bf16.msra.mxu0 0
        %764 = vmatprep.subr.bf16.mxu0 0
        %765 = vmatpush1.bf16.msra.mxu0 0
        %766 = vmatprep.subr.bf16.mxu0 0
        %767 = vmatpush1.bf16.msra.mxu0 0
        %768 = vmatprep.subr.bf16.mxu0 0
        %769 = vmatpush1.bf16.msra.mxu0 0
        %770 = vmatprep.subr.bf16.mxu0 0
        %771 = vmatpush1.bf16.msra.mxu0 0
        %772 = vmatprep.subr.bf16.mxu0 0
        %773 = vmatpush1.bf16.msra.mxu0 0
        %774 = vmatprep.subr.bf16.mxu0 0
        %775 = vmatpush1.bf16.msra.mxu0 0
        %776 = vmatprep.mubr.bf16.mxu0 0
        %777 = vmatmul.mubr.bf16.gmra.mrb[0].mxu0 %v739
        %v778 = vpop.f32.mrb[0].mxu0
        %v779 = vadd.f32 0.0, %v778
        %v780 = vpop.f32.mrb[0].mxu0
        %v781 = vpop.f32.mrb[0].mxu0
        %v782 = vadd.f32 0.0, %v781
        %v783 = vpop.f32.mrb[0].mxu0
        %784 = vdwg.mxu0
        %v785 = vadd.f32 %v728, %v779
        %v786 = vadd.f32 %v729, %v782
        %s787 = scalar_lea.vmem %s228, 20
        %v788 = vld [vmem:[%s787] sm:$0x3]
        %790 = vrot.lane.b32.xlu0 %v735, 124
        %v791 = vpop.permute.xlu0 %790
        %v793 = vsel %vm260, %v791, 0
        %v796 = vsel %vm264, %v788, 0
        %798 = vmatprep.subr.bf16.mxu0 0
        %799 = vmatpush1.bf16.msra.mxu0 %v796
        %800 = vmatprep.subr.bf16.mxu0 0
        %801 = vmatpush1.bf16.msra.mxu0 0
        %802 = vmatprep.subr.bf16.mxu0 0
        %803 = vmatpush1.bf16.msra.mxu0 0
        %804 = vmatprep.subr.bf16.mxu0 0
        %805 = vmatpush1.bf16.msra.mxu0 0
        %806 = vmatprep.subr.bf16.mxu0 0
        %807 = vmatpush1.bf16.msra.mxu0 0
        %808 = vmatprep.subr.bf16.mxu0 0
        %809 = vmatpush1.bf16.msra.mxu0 0
        %810 = vmatprep.subr.bf16.mxu0 0
        %811 = vmatpush1.bf16.msra.mxu0 0
        %812 = vmatprep.subr.bf16.mxu0 0
        %813 = vmatpush1.bf16.msra.mxu0 0
        %814 = vmatprep.subr.bf16.mxu0 0
        %815 = vmatpush1.bf16.msra.mxu0 0
        %816 = vmatprep.subr.bf16.mxu0 0
        %817 = vmatpush1.bf16.msra.mxu0 0
        %818 = vmatprep.subr.bf16.mxu0 0
        %819 = vmatpush1.bf16.msra.mxu0 0
        %820 = vmatprep.subr.bf16.mxu0 0
        %821 = vmatpush1.bf16.msra.mxu0 0
        %822 = vmatprep.subr.bf16.mxu0 0
        %823 = vmatpush1.bf16.msra.mxu0 0
        %824 = vmatprep.subr.bf16.mxu0 0
        %825 = vmatpush1.bf16.msra.mxu0 0
        %826 = vmatprep.subr.bf16.mxu0 0
        %827 = vmatpush1.bf16.msra.mxu0 0
        %828 = vmatprep.subr.bf16.mxu0 0
        %829 = vmatpush1.bf16.msra.mxu0 0
        %830 = vmatprep.mubr.bf16.mxu0 0
        %831 = vmatmul.mubr.bf16.gmra.mrb[0].mxu0 %v793
        %v832 = vpop.f32.mrb[0].mxu0
        %v833 = vadd.f32 0.0, %v832
        %v834 = vpop.f32.mrb[0].mxu0
        %v835 = vpop.f32.mrb[0].mxu0
        %v836 = vadd.f32 0.0, %v835
        %v837 = vpop.f32.mrb[0].mxu0
        %838 = vdwg.mxu0
        %v839 = vadd.f32 %v785, %v833
        %v840 = vadd.f32 %v786, %v836
        %s841 = scalar_lea.vmem %s228, 22
        %v842 = vld [vmem:[%s841] sm:$0x3]
        %v843 = vshrl.u32 %v735, 16
        %v845 = vshll.u32 %v735, 16
        %v847 = vrot.slane %v845, 1
        %v848 = vor.u32 %v843, %v847
        %v850 = vsel %vm260, %v848, 0
        %v853 = vsel %vm264, %v842, 0
        %855 = vmatprep.subr.bf16.mxu0 0
        %856 = vmatpush1.bf16.msra.mxu0 %v853
        %857 = vmatprep.subr.bf16.mxu0 0
        %858 = vmatpush1.bf16.msra.mxu0 0
        %859 = vmatprep.subr.bf16.mxu0 0
        %860 = vmatpush1.bf16.msra.mxu0 0
        %861 = vmatprep.subr.bf16.mxu0 0
        %862 = vmatpush1.bf16.msra.mxu0 0
        %863 = vmatprep.subr.bf16.mxu0 0
        %864 = vmatpush1.bf16.msra.mxu0 0
        %865 = vmatprep.subr.bf16.mxu0 0
        %866 = vmatpush1.bf16.msra.mxu0 0
        %867 = vmatprep.subr.bf16.mxu0 0
        %868 = vmatpush1.bf16.msra.mxu0 0
        %869 = vmatprep.subr.bf16.mxu0 0
        %870 = vmatpush1.bf16.msra.mxu0 0
        %871 = vmatprep.subr.bf16.mxu0 0
        %872 = vmatpush1.bf16.msra.mxu0 0
        %873 = vmatprep.subr.bf16.mxu0 0
        %874 = vmatpush1.bf16.msra.mxu0 0
        %875 = vmatprep.subr.bf16.mxu0 0
        %876 = vmatpush1.bf16.msra.mxu0 0
        %877 = vmatprep.subr.bf16.mxu0 0
        %878 = vmatpush1.bf16.msra.mxu0 0
        %879 = vmatprep.subr.bf16.mxu0 0
        %880 = vmatpush1.bf16.msra.mxu0 0
        %881 = vmatprep.subr.bf16.mxu0 0
        %882 = vmatpush1.bf16.msra.mxu0 0
        %883 = vmatprep.subr.bf16.mxu0 0
        %884 = vmatpush1.bf16.msra.mxu0 0
        %885 = vmatprep.subr.bf16.mxu0 0
        %886 = vmatpush1.bf16.msra.mxu0 0
        %887 = vmatprep.mubr.bf16.mxu0 0
        %888 = vmatmul.mubr.bf16.gmra.mrb[0].mxu0 %v850
        %v889 = vpop.f32.mrb[0].mxu0
        %v890 = vadd.f32 0.0, %v889
        %v891 = vpop.f32.mrb[0].mxu0
        %v892 = vpop.f32.mrb[0].mxu0
        %v893 = vadd.f32 0.0, %v892
        %v894 = vpop.f32.mrb[0].mxu0
        %895 = vdwg.mxu0
        %v896 = vadd.f32 %v839, %v890
        %v897 = vadd.f32 %v840, %v893
        %s898 = scalar_lea.vmem %s228, 24
        %v899 = vld [vmem:[%s898] sm:$0x3]
        %900 = vrot.lane.b32.xlu0 %v848, 124
        %v901 = vpop.permute.xlu0 %900
        %v903 = vsel %vm260, %v901, 0
        %v906 = vsel %vm264, %v899, 0
        %908 = vmatprep.subr.bf16.mxu0 0
        %909 = vmatpush1.bf16.msra.mxu0 %v906
        %910 = vmatprep.subr.bf16.mxu0 0
        %911 = vmatpush1.bf16.msra.mxu0 0
        %912 = vmatprep.subr.bf16.mxu0 0
        %913 = vmatpush1.bf16.msra.mxu0 0
        %914 = vmatprep.subr.bf16.mxu0 0
        %915 = vmatpush1.bf16.msra.mxu0 0
        %916 = vmatprep.subr.bf16.mxu0 0
        %917 = vmatpush1.bf16.msra.mxu0 0
        %918 = vmatprep.subr.bf16.mxu0 0
        %919 = vmatpush1.bf16.msra.mxu0 0
        %920 = vmatprep.subr.bf16.mxu0 0
        %921 = vmatpush1.bf16.msra.mxu0 0
        %922 = vmatprep.subr.bf16.mxu0 0
        %923 = vmatpush1.bf16.msra.mxu0 0
        %924 = vmatprep.subr.bf16.mxu0 0
        %925 = vmatpush1.bf16.msra.mxu0 0
        %926 = vmatprep.subr.bf16.mxu0 0
        %927 = vmatpush1.bf16.msra.mxu0 0
        %928 = vmatprep.subr.bf16.mxu0 0
        %929 = vmatpush1.bf16.msra.mxu0 0
        %930 = vmatprep.subr.bf16.mxu0 0
        %931 = vmatpush1.bf16.msra.mxu0 0
        %932 = vmatprep.subr.bf16.mxu0 0
        %933 = vmatpush1.bf16.msra.mxu0 0
        %934 = vmatprep.subr.bf16.mxu0 0
        %935 = vmatpush1.bf16.msra.mxu0 0
        %936 = vmatprep.subr.bf16.mxu0 0
        %937 = vmatpush1.bf16.msra.mxu0 0
        %938 = vmatprep.subr.bf16.mxu0 0
        %939 = vmatpush1.bf16.msra.mxu0 0
        %940 = vmatprep.mubr.bf16.mxu0 0
        %941 = vmatmul.mubr.bf16.gmra.mrb[0].mxu0 %v903
        %v942 = vpop.f32.mrb[0].mxu0
        %v943 = vadd.f32 0.0, %v942
        %v944 = vpop.f32.mrb[0].mxu0
        %v945 = vpop.f32.mrb[0].mxu0
        %v946 = vadd.f32 0.0, %v945
        %v947 = vpop.f32.mrb[0].mxu0
        %948 = vdwg.mxu0
        %v949 = vadd.f32 %v896, %v943
        %v950 = vadd.f32 %v897, %v946
        %s951 = scalar_lea.vmem %s228, 26
        %v952 = vld [vmem:[%s951] sm:$0x3]
        %v953 = vrot.slane %v735, 1
        %v955 = vsel %vm260, %v953, 0
        %v958 = vsel %vm264, %v952, 0
        %960 = vmatprep.subr.bf16.mxu0 0
        %961 = vmatpush1.bf16.msra.mxu0 %v958
        %962 = vmatprep.subr.bf16.mxu0 0
        %963 = vmatpush1.bf16.msra.mxu0 0
        %964 = vmatprep.subr.bf16.mxu0 0
        %965 = vmatpush1.bf16.msra.mxu0 0
        %966 = vmatprep.subr.bf16.mxu0 0
        %967 = vmatpush1.bf16.msra.mxu0 0
        %968 = vmatprep.subr.bf16.mxu0 0
        %969 = vmatpush1.bf16.msra.mxu0 0
        %970 = vmatprep.subr.bf16.mxu0 0
        %971 = vmatpush1.bf16.msra.mxu0 0
        %972 = vmatprep.subr.bf16.mxu0 0
        %973 = vmatpush1.bf16.msra.mxu0 0
        %974 = vmatprep.subr.bf16.mxu0 0
        %975 = vmatpush1.bf16.msra.mxu0 0
        %976 = vmatprep.subr.bf16.mxu0 0
        %977 = vmatpush1.bf16.msra.mxu0 0
        %978 = vmatprep.subr.bf16.mxu0 0
        %979 = vmatpush1.bf16.msra.mxu0 0
        %980 = vmatprep.subr.bf16.mxu0 0
        %981 = vmatpush1.bf16.msra.mxu0 0
        %982 = vmatprep.subr.bf16.mxu0 0
        %983 = vmatpush1.bf16.msra.mxu0 0
        %984 = vmatprep.subr.bf16.mxu0 0
        %985 = vmatpush1.bf16.msra.mxu0 0
        %986 = vmatprep.subr.bf16.mxu0 0
        %987 = vmatpush1.bf16.msra.mxu0 0
        %988 = vmatprep.subr.bf16.mxu0 0
        %989 = vmatpush1.bf16.msra.mxu0 0
        %990 = vmatprep.subr.bf16.mxu0 0
        %991 = vmatpush1.bf16.msra.mxu0 0
        %992 = vmatprep.mubr.bf16.mxu0 0
        %993 = vmatmul.mubr.bf16.gmra.mrb[0].mxu0 %v955
        %v994 = vpop.f32.mrb[0].mxu0
        %v995 = vadd.f32 0.0, %v994
        %v996 = vpop.f32.mrb[0].mxu0
        %v997 = vpop.f32.mrb[0].mxu0
        %v998 = vadd.f32 0.0, %v997
        %v999 = vpop.f32.mrb[0].mxu0
        %1000 = vdwg.mxu0
        %v1001 = vadd.f32 %v949, %v995
        %v1002 = vadd.f32 %v950, %v998
        %s1003 = scalar_lea.vmem %s228, 28
        %v1004 = vld [vmem:[%s1003] sm:$0x3]
        %1005 = vrot.lane.b32.xlu0 %v953, 124
        %v1006 = vpop.permute.xlu0 %1005
        %v1008 = vsel %vm260, %v1006, 0
        %v1011 = vsel %vm264, %v1004, 0
        %1013 = vmatprep.subr.bf16.mxu0 0
        %1014 = vmatpush1.bf16.msra.mxu0 %v1011
        %1015 = vmatprep.subr.bf16.mxu0 0
        %1016 = vmatpush1.bf16.msra.mxu0 0
        %1017 = vmatprep.subr.bf16.mxu0 0
        %1018 = vmatpush1.bf16.msra.mxu0 0
        %1019 = vmatprep.subr.bf16.mxu0 0
        %1020 = vmatpush1.bf16.msra.mxu0 0
        %1021 = vmatprep.subr.bf16.mxu0 0
        %1022 = vmatpush1.bf16.msra.mxu0 0
        %1023 = vmatprep.subr.bf16.mxu0 0
        %1024 = vmatpush1.bf16.msra.mxu0 0
        %1025 = vmatprep.subr.bf16.mxu0 0
        %1026 = vmatpush1.bf16.msra.mxu0 0
        %1027 = vmatprep.subr.bf16.mxu0 0
        %1028 = vmatpush1.bf16.msra.mxu0 0
        %1029 = vmatprep.subr.bf16.mxu0 0
        %1030 = vmatpush1.bf16.msra.mxu0 0
        %1031 = vmatprep.subr.bf16.mxu0 0
        %1032 = vmatpush1.bf16.msra.mxu0 0
        %1033 = vmatprep.subr.bf16.mxu0 0
        %1034 = vmatpush1.bf16.msra.mxu0 0
        %1035 = vmatprep.subr.bf16.mxu0 0
        %1036 = vmatpush1.bf16.msra.mxu0 0
        %1037 = vmatprep.subr.bf16.mxu0 0
        %1038 = vmatpush1.bf16.msra.mxu0 0
        %1039 = vmatprep.subr.bf16.mxu0 0
        %1040 = vmatpush1.bf16.msra.mxu0 0
        %1041 = vmatprep.subr.bf16.mxu0 0
        %1042 = vmatpush1.bf16.msra.mxu0 0
        %1043 = vmatprep.subr.bf16.mxu0 0
        %1044 = vmatpush1.bf16.msra.mxu0 0
        %1045 = vmatprep.mubr.bf16.mxu0 0
        %1046 = vmatmul.mubr.bf16.gmra.mrb[0].mxu0 %v1008
        %v1047 = vpop.f32.mrb[0].mxu0
        %v1048 = vadd.f32 0.0, %v1047
        %v1049 = vpop.f32.mrb[0].mxu0
        %v1050 = vpop.f32.mrb[0].mxu0
        %v1051 = vadd.f32 0.0, %v1050
        %v1052 = vpop.f32.mrb[0].mxu0
        %1053 = vdwg.mxu0
        %v1054 = vadd.f32 %v1001, %v1048
        %v1055 = vadd.f32 %v1002, %v1051
        %s1056 = scalar_lea.vmem %s228, 30
        %v1057 = vld [vmem:[%s1056] sm:$0x3]
        %v1058 = vrot.slane %v843, 1
        %v1059 = vrot.slane %v845, 2
        %v1060 = vor.u32 %v1058, %v1059
        %v1062 = vsel %vm260, %v1060, 0
        %v1065 = vsel %vm264, %v1057, 0
        %1067 = vmatprep.subr.bf16.mxu0 0
        %1068 = vmatpush1.bf16.msra.mxu0 %v1065
        %1069 = vmatprep.subr.bf16.mxu0 0
        %1070 = vmatpush1.bf16.msra.mxu0 0
        %1071 = vmatprep.subr.bf16.mxu0 0
        %1072 = vmatpush1.bf16.msra.mxu0 0
        %1073 = vmatprep.subr.bf16.mxu0 0
        %1074 = vmatpush1.bf16.msra.mxu0 0
        %1075 = vmatprep.subr.bf16.mxu0 0
        %1076 = vmatpush1.bf16.msra.mxu0 0
        %1077 = vmatprep.subr.bf16.mxu0 0
        %1078 = vmatpush1.bf16.msra.mxu0 0
        %1079 = vmatprep.subr.bf16.mxu0 0
        %1080 = vmatpush1.bf16.msra.mxu0 0
        %1081 = vmatprep.subr.bf16.mxu0 0
        %1082 = vmatpush1.bf16.msra.mxu0 0
        %1083 = vmatprep.subr.bf16.mxu0 0
        %1084 = vmatpush1.bf16.msra.mxu0 0
        %1085 = vmatprep.subr.bf16.mxu0 0
        %1086 = vmatpush1.bf16.msra.mxu0 0
        %1087 = vmatprep.subr.bf16.mxu0 0
        %1088 = vmatpush1.bf16.msra.mxu0 0
        %1089 = vmatprep.subr.bf16.mxu0 0
        %1090 = vmatpush1.bf16.msra.mxu0 0
        %1091 = vmatprep.subr.bf16.mxu0 0
        %1092 = vmatpush1.bf16.msra.mxu0 0
        %1093 = vmatprep.subr.bf16.mxu0 0
        %1094 = vmatpush1.bf16.msra.mxu0 0
        %1095 = vmatprep.subr.bf16.mxu0 0
        %1096 = vmatpush1.bf16.msra.mxu0 0
        %1097 = vmatprep.subr.bf16.mxu0 0
        %1098 = vmatpush1.bf16.msra.mxu0 0
        %1099 = vmatprep.mubr.bf16.mxu0 0
        %1100 = vmatmul.mubr.bf16.gmra.mrb[0].mxu0 %v1062
        %v1101 = vpop.f32.mrb[0].mxu0
        %v1102 = vadd.f32 0.0, %v1101
        %v1103 = vpop.f32.mrb[0].mxu0
        %v1104 = vpop.f32.mrb[0].mxu0
        %v1105 = vadd.f32 0.0, %v1104
        %v1106 = vpop.f32.mrb[0].mxu0
        %1107 = vdwg.mxu0
        %v1108 = vadd.f32 %v1054, %v1102
        %v1109 = vadd.f32 %v1055, %v1105
        %s1110 = scalar_lea.vmem %s228, 32
        %v1111 = vld [vmem:[%s1110] sm:$0x3]
        %1112 = vrot.lane.b32.xlu0 %v1060, 124
        %v1113 = vpop.permute.xlu0 %1112
        %v1115 = vsel %vm260, %v1113, 0
        %v1118 = vsel %vm264, %v1111, 0
        %1120 = vmatprep.subr.bf16.mxu0 0
        %1121 = vmatpush1.bf16.msra.mxu0 %v1118
        %1122 = vmatprep.subr.bf16.mxu0 0
        %1123 = vmatpush1.bf16.msra.mxu0 0
        %1124 = vmatprep.subr.bf16.mxu0 0
        %1125 = vmatpush1.bf16.msra.mxu0 0
        %1126 = vmatprep.subr.bf16.mxu0 0
        %1127 = vmatpush1.bf16.msra.mxu0 0
        %1128 = vmatprep.subr.bf16.mxu0 0
        %1129 = vmatpush1.bf16.msra.mxu0 0
        %1130 = vmatprep.subr.bf16.mxu0 0
        %1131 = vmatpush1.bf16.msra.mxu0 0
        %1132 = vmatprep.subr.bf16.mxu0 0
        %1133 = vmatpush1.bf16.msra.mxu0 0
        %1134 = vmatprep.subr.bf16.mxu0 0
        %1135 = vmatpush1.bf16.msra.mxu0 0
        %1136 = vmatprep.subr.bf16.mxu0 0
        %1137 = vmatpush1.bf16.msra.mxu0 0
        %1138 = vmatprep.subr.bf16.mxu0 0
        %1139 = vmatpush1.bf16.msra.mxu0 0
        %1140 = vmatprep.subr.bf16.mxu0 0
        %1141 = vmatpush1.bf16.msra.mxu0 0
        %1142 = vmatprep.subr.bf16.mxu0 0
        %1143 = vmatpush1.bf16.msra.mxu0 0
        %1144 = vmatprep.subr.bf16.mxu0 0
        %1145 = vmatpush1.bf16.msra.mxu0 0
        %1146 = vmatprep.subr.bf16.mxu0 0
        %1147 = vmatpush1.bf16.msra.mxu0 0
        %1148 = vmatprep.subr.bf16.mxu0 0
        %1149 = vmatpush1.bf16.msra.mxu0 0
        %1150 = vmatprep.subr.bf16.mxu0 0
        %1151 = vmatpush1.bf16.msra.mxu0 0
        %1152 = vmatprep.mubr.bf16.mxu0 0
        %1153 = vmatmul.mubr.bf16.gmra.mrb[0].mxu0 %v1115
        %v1154 = vpop.f32.mrb[0].mxu0
        %v1155 = vadd.f32 0.0, %v1154
        %v1156 = vpop.f32.mrb[0].mxu0
        %v1157 = vpop.f32.mrb[0].mxu0
        %v1158 = vadd.f32 0.0, %v1157
        %v1159 = vpop.f32.mrb[0].mxu0
        %1160 = vdwg.mxu0
        %v1161 = vadd.f32 %v1108, %v1155
        %v1162 = vadd.f32 %v1109, %v1158
        %s1163 = scalar_lea.vmem %s228, 34
        %v1164 = vld [vmem:[%s1163] sm:$0x3]
        %v1165 = vrot.slane %v735, 2
        %v1167 = vsel %vm260, %v1165, 0
        %v1170 = vsel %vm264, %v1164, 0
        %1172 = vmatprep.subr.bf16.mxu0 0
        %1173 = vmatpush1.bf16.msra.mxu0 %v1170
        %1174 = vmatprep.subr.bf16.mxu0 0
        %1175 = vmatpush1.bf16.msra.mxu0 0
        %1176 = vmatprep.subr.bf16.mxu0 0
        %1177 = vmatpush1.bf16.msra.mxu0 0
        %1178 = vmatprep.subr.bf16.mxu0 0
        %1179 = vmatpush1.bf16.msra.mxu0 0
        %1180 = vmatprep.subr.bf16.mxu0 0
        %1181 = vmatpush1.bf16.msra.mxu0 0
        %1182 = vmatprep.subr.bf16.mxu0 0
        %1183 = vmatpush1.bf16.msra.mxu0 0
        %1184 = vmatprep.subr.bf16.mxu0 0
        %1185 = vmatpush1.bf16.msra.mxu0 0
        %1186 = vmatprep.subr.bf16.mxu0 0
        %1187 = vmatpush1.bf16.msra.mxu0 0
        %1188 = vmatprep.subr.bf16.mxu0 0
        %1189 = vmatpush1.bf16.msra.mxu0 0
        %1190 = vmatprep.subr.bf16.mxu0 0
        %1191 = vmatpush1.bf16.msra.mxu0 0
        %1192 = vmatprep.subr.bf16.mxu0 0
        %1193 = vmatpush1.bf16.msra.mxu0 0
        %1194 = vmatprep.subr.bf16.mxu0 0
        %1195 = vmatpush1.bf16.msra.mxu0 0
        %1196 = vmatprep.subr.bf16.mxu0 0
        %1197 = vmatpush1.bf16.msra.mxu0 0
        %1198 = vmatprep.subr.bf16.mxu0 0
        %1199 = vmatpush1.bf16.msra.mxu0 0
        %1200 = vmatprep.subr.bf16.mxu0 0
        %1201 = vmatpush1.bf16.msra.mxu0 0
        %1202 = vmatprep.subr.bf16.mxu0 0
        %1203 = vmatpush1.bf16.msra.mxu0 0
        %1204 = vmatprep.mubr.bf16.mxu0 0
        %1205 = vmatmul.mubr.bf16.gmra.mrb[0].mxu0 %v1167
        %v1206 = vpop.f32.mrb[0].mxu0
        %v1207 = vadd.f32 0.0, %v1206
        %v1208 = vpop.f32.mrb[0].mxu0
        %v1209 = vpop.f32.mrb[0].mxu0
        %v1210 = vadd.f32 0.0, %v1209
        %v1211 = vpop.f32.mrb[0].mxu0
        %1212 = vdwg.mxu0
        %v1213 = vadd.f32 %v1161, %v1207
        %v1214 = vadd.f32 %v1162, %v1210
        %s1215 = sadd.s32 %s244, 4
        %s1216 = smul.u32 %s1215, 16
        %s1217 = scalar_lea.vmem %s223, %s1216
        %v1218 = vld [vmem:[%s1217] sm:$0xff]
        %v1219 = vld [vmem:[%s1217 + $0x8] sm:$0x7f]
        %v1220 = vpack.c.bf16 %v1219, %v1218
        %s1221 = scalar_lea.vmem %s228, 36
        %v1222 = vld [vmem:[%s1221] sm:$0x3]
        %v1224 = vsel %vm260, %v1220, 0
        %v1227 = vsel %vm264, %v1222, 0
        %1229 = vmatprep.subr.bf16.mxu0 0
        %1230 = vmatpush1.bf16.msra.mxu0 %v1227
        %1231 = vmatprep.subr.bf16.mxu0 0
        %1232 = vmatpush1.bf16.msra.mxu0 0
        %1233 = vmatprep.subr.bf16.mxu0 0
        %1234 = vmatpush1.bf16.msra.mxu0 0
        %1235 = vmatprep.subr.bf16.mxu0 0
        %1236 = vmatpush1.bf16.msra.mxu0 0
        %1237 = vmatprep.subr.bf16.mxu0 0
        %1238 = vmatpush1.bf16.msra.mxu0 0
        %1239 = vmatprep.subr.bf16.mxu0 0
        %1240 = vmatpush1.bf16.msra.mxu0 0
        %1241 = vmatprep.subr.bf16.mxu0 0
        %1242 = vmatpush1.bf16.msra.mxu0 0
        %1243 = vmatprep.subr.bf16.mxu0 0
        %1244 = vmatpush1.bf16.msra.mxu0 0
        %1245 = vmatprep.subr.bf16.mxu0 0
        %1246 = vmatpush1.bf16.msra.mxu0 0
        %1247 = vmatprep.subr.bf16.mxu0 0
        %1248 = vmatpush1.bf16.msra.mxu0 0
        %1249 = vmatprep.subr.bf16.mxu0 0
        %1250 = vmatpush1.bf16.msra.mxu0 0
        %1251 = vmatprep.subr.bf16.mxu0 0
        %1252 = vmatpush1.bf16.msra.mxu0 0
        %1253 = vmatprep.subr.bf16.mxu0 0
        %1254 = vmatpush1.bf16.msra.mxu0 0
        %1255 = vmatprep.subr.bf16.mxu0 0
        %1256 = vmatpush1.bf16.msra.mxu0 0
        %1257 = vmatprep.subr.bf16.mxu0 0
        %1258 = vmatpush1.bf16.msra.mxu0 0
        %1259 = vmatprep.subr.bf16.mxu0 0
        %1260 = vmatpush1.bf16.msra.mxu0 0
        %1261 = vmatprep.mubr.bf16.mxu0 0
        %1262 = vmatmul.mubr.bf16.gmra.mrb[0].mxu0 %v1224
        %v1263 = vpop.f32.mrb[0].mxu0
        %v1264 = vadd.f32 0.0, %v1263
        %v1265 = vpop.f32.mrb[0].mxu0
        %v1266 = vpop.f32.mrb[0].mxu0
        %v1267 = vadd.f32 0.0, %v1266
        %v1268 = vpop.f32.mrb[0].mxu0
        %1269 = vdwg.mxu0
        %v1270 = vadd.f32 %v1213, %v1264
        %v1271 = vadd.f32 %v1214, %v1267
        %s1272 = scalar_lea.vmem %s228, 38
        %v1273 = vld [vmem:[%s1272] sm:$0x3]
        %1275 = vrot.lane.b32.xlu0 %v1220, 124
        %v1276 = vpop.permute.xlu0 %1275
        %v1278 = vsel %vm260, %v1276, 0
        %v1281 = vsel %vm264, %v1273, 0
        %1283 = vmatprep.subr.bf16.mxu0 0
        %1284 = vmatpush1.bf16.msra.mxu0 %v1281
        %1285 = vmatprep.subr.bf16.mxu0 0
        %1286 = vmatpush1.bf16.msra.mxu0 0
        %1287 = vmatprep.subr.bf16.mxu0 0
        %1288 = vmatpush1.bf16.msra.mxu0 0
        %1289 = vmatprep.subr.bf16.mxu0 0
        %1290 = vmatpush1.bf16.msra.mxu0 0
        %1291 = vmatprep.subr.bf16.mxu0 0
        %1292 = vmatpush1.bf16.msra.mxu0 0
        %1293 = vmatprep.subr.bf16.mxu0 0
        %1294 = vmatpush1.bf16.msra.mxu0 0
        %1295 = vmatprep.subr.bf16.mxu0 0
        %1296 = vmatpush1.bf16.msra.mxu0 0
        %1297 = vmatprep.subr.bf16.mxu0 0
        %1298 = vmatpush1.bf16.msra.mxu0 0
        %1299 = vmatprep.subr.bf16.mxu0 0
        %1300 = vmatpush1.bf16.msra.mxu0 0
        %1301 = vmatprep.subr.bf16.mxu0 0
        %1302 = vmatpush1.bf16.msra.mxu0 0
        %1303 = vmatprep.subr.bf16.mxu0 0
        %1304 = vmatpush1.bf16.msra.mxu0 0
        %1305 = vmatprep.subr.bf16.mxu0 0
        %1306 = vmatpush1.bf16.msra.mxu0 0
        %1307 = vmatprep.subr.bf16.mxu0 0
        %1308 = vmatpush1.bf16.msra.mxu0 0
        %1309 = vmatprep.subr.bf16.mxu0 0
        %1310 = vmatpush1.bf16.msra.mxu0 0
        %1311 = vmatprep.subr.bf16.mxu0 0
        %1312 = vmatpush1.bf16.msra.mxu0 0
        %1313 = vmatprep.subr.bf16.mxu0 0
        %1314 = vmatpush1.bf16.msra.mxu0 0
        %1315 = vmatprep.mubr.bf16.mxu0 0
        %1316 = vmatmul.mubr.bf16.gmra.mrb[0].mxu0 %v1278
        %v1317 = vpop.f32.mrb[0].mxu0
        %v1318 = vadd.f32 0.0, %v1317
        %v1319 = vpop.f32.mrb[0].mxu0
        %v1320 = vpop.f32.mrb[0].mxu0
        %v1321 = vadd.f32 0.0, %v1320
        %v1322 = vpop.f32.mrb[0].mxu0
        %1323 = vdwg.mxu0
        %v1324 = vadd.f32 %v1270, %v1318
        %v1325 = vadd.f32 %v1271, %v1321
        %s1326 = scalar_lea.vmem %s228, 40
        %v1327 = vld [vmem:[%s1326] sm:$0x3]
        %v1328 = vshrl.u32 %v1220, 16
        %v1330 = vshll.u32 %v1220, 16
        %v1332 = vrot.slane %v1330, 1
        %v1333 = vor.u32 %v1328, %v1332
        %v1335 = vsel %vm260, %v1333, 0
        %v1338 = vsel %vm264, %v1327, 0
        %1340 = vmatprep.subr.bf16.mxu0 0
        %1341 = vmatpush1.bf16.msra.mxu0 %v1338
        %1342 = vmatprep.subr.bf16.mxu0 0
        %1343 = vmatpush1.bf16.msra.mxu0 0
        %1344 = vmatprep.subr.bf16.mxu0 0
        %1345 = vmatpush1.bf16.msra.mxu0 0
        %1346 = vmatprep.subr.bf16.mxu0 0
        %1347 = vmatpush1.bf16.msra.mxu0 0
        %1348 = vmatprep.subr.bf16.mxu0 0
        %1349 = vmatpush1.bf16.msra.mxu0 0
        %1350 = vmatprep.subr.bf16.mxu0 0
        %1351 = vmatpush1.bf16.msra.mxu0 0
        %1352 = vmatprep.subr.bf16.mxu0 0
        %1353 = vmatpush1.bf16.msra.mxu0 0
        %1354 = vmatprep.subr.bf16.mxu0 0
        %1355 = vmatpush1.bf16.msra.mxu0 0
        %1356 = vmatprep.subr.bf16.mxu0 0
        %1357 = vmatpush1.bf16.msra.mxu0 0
        %1358 = vmatprep.subr.bf16.mxu0 0
        %1359 = vmatpush1.bf16.msra.mxu0 0
        %1360 = vmatprep.subr.bf16.mxu0 0
        %1361 = vmatpush1.bf16.msra.mxu0 0
        %1362 = vmatprep.subr.bf16.mxu0 0
        %1363 = vmatpush1.bf16.msra.mxu0 0
        %1364 = vmatprep.subr.bf16.mxu0 0
        %1365 = vmatpush1.bf16.msra.mxu0 0
        %1366 = vmatprep.subr.bf16.mxu0 0
        %1367 = vmatpush1.bf16.msra.mxu0 0
        %1368 = vmatprep.subr.bf16.mxu0 0
        %1369 = vmatpush1.bf16.msra.mxu0 0
        %1370 = vmatprep.subr.bf16.mxu0 0
        %1371 = vmatpush1.bf16.msra.mxu0 0
        %1372 = vmatprep.mubr.bf16.mxu0 0
        %1373 = vmatmul.mubr.bf16.gmra.mrb[0].mxu0 %v1335
        %v1374 = vpop.f32.mrb[0].mxu0
        %v1375 = vadd.f32 0.0, %v1374
        %v1376 = vpop.f32.mrb[0].mxu0
        %v1377 = vpop.f32.mrb[0].mxu0
        %v1378 = vadd.f32 0.0, %v1377
        %v1379 = vpop.f32.mrb[0].mxu0
        %1380 = vdwg.mxu0
        %v1381 = vadd.f32 %v1324, %v1375
        %v1382 = vadd.f32 %v1325, %v1378
        %s1383 = scalar_lea.vmem %s228, 42
        %v1384 = vld [vmem:[%s1383] sm:$0x3]
        %1385 = vrot.lane.b32.xlu0 %v1333, 124
        %v1386 = vpop.permute.xlu0 %1385
        %v1388 = vsel %vm260, %v1386, 0
        %v1391 = vsel %vm264, %v1384, 0
        %1393 = vmatprep.subr.bf16.mxu0 0
        %1394 = vmatpush1.bf16.msra.mxu0 %v1391
        %1395 = vmatprep.subr.bf16.mxu0 0
        %1396 = vmatpush1.bf16.msra.mxu0 0
        %1397 = vmatprep.subr.bf16.mxu0 0
        %1398 = vmatpush1.bf16.msra.mxu0 0
        %1399 = vmatprep.subr.bf16.mxu0 0
        %1400 = vmatpush1.bf16.msra.mxu0 0
        %1401 = vmatprep.subr.bf16.mxu0 0
        %1402 = vmatpush1.bf16.msra.mxu0 0
        %1403 = vmatprep.subr.bf16.mxu0 0
        %1404 = vmatpush1.bf16.msra.mxu0 0
        %1405 = vmatprep.subr.bf16.mxu0 0
        %1406 = vmatpush1.bf16.msra.mxu0 0
        %1407 = vmatprep.subr.bf16.mxu0 0
        %1408 = vmatpush1.bf16.msra.mxu0 0
        %1409 = vmatprep.subr.bf16.mxu0 0
        %1410 = vmatpush1.bf16.msra.mxu0 0
        %1411 = vmatprep.subr.bf16.mxu0 0
        %1412 = vmatpush1.bf16.msra.mxu0 0
        %1413 = vmatprep.subr.bf16.mxu0 0
        %1414 = vmatpush1.bf16.msra.mxu0 0
        %1415 = vmatprep.subr.bf16.mxu0 0
        %1416 = vmatpush1.bf16.msra.mxu0 0
        %1417 = vmatprep.subr.bf16.mxu0 0
        %1418 = vmatpush1.bf16.msra.mxu0 0
        %1419 = vmatprep.subr.bf16.mxu0 0
        %1420 = vmatpush1.bf16.msra.mxu0 0
        %1421 = vmatprep.subr.bf16.mxu0 0
        %1422 = vmatpush1.bf16.msra.mxu0 0
        %1423 = vmatprep.subr.bf16.mxu0 0
        %1424 = vmatpush1.bf16.msra.mxu0 0
        %1425 = vmatprep.mubr.bf16.mxu0 0
        %1426 = vmatmul.mubr.bf16.gmra.mrb[0].mxu0 %v1388
        %v1427 = vpop.f32.mrb[0].mxu0
        %v1428 = vadd.f32 0.0, %v1427
        %v1429 = vpop.f32.mrb[0].mxu0
        %v1430 = vpop.f32.mrb[0].mxu0
        %v1431 = vadd.f32 0.0, %v1430
        %v1432 = vpop.f32.mrb[0].mxu0
        %1433 = vdwg.mxu0
        %v1434 = vadd.f32 %v1381, %v1428
        %v1435 = vadd.f32 %v1382, %v1431
        %s1436 = scalar_lea.vmem %s228, 44
        %v1437 = vld [vmem:[%s1436] sm:$0x3]
        %v1438 = vrot.slane %v1220, 1
        %v1440 = vsel %vm260, %v1438, 0
        %v1443 = vsel %vm264, %v1437, 0
        %1445 = vmatprep.subr.bf16.mxu0 0
        %1446 = vmatpush1.bf16.msra.mxu0 %v1443
        %1447 = vmatprep.subr.bf16.mxu0 0
        %1448 = vmatpush1.bf16.msra.mxu0 0
        %1449 = vmatprep.subr.bf16.mxu0 0
        %1450 = vmatpush1.bf16.msra.mxu0 0
        %1451 = vmatprep.subr.bf16.mxu0 0
        %1452 = vmatpush1.bf16.msra.mxu0 0
        %1453 = vmatprep.subr.bf16.mxu0 0
        %1454 = vmatpush1.bf16.msra.mxu0 0
        %1455 = vmatprep.subr.bf16.mxu0 0
        %1456 = vmatpush1.bf16.msra.mxu0 0
        %1457 = vmatprep.subr.bf16.mxu0 0
        %1458 = vmatpush1.bf16.msra.mxu0 0
        %1459 = vmatprep.subr.bf16.mxu0 0
        %1460 = vmatpush1.bf16.msra.mxu0 0
        %1461 = vmatprep.subr.bf16.mxu0 0
        %1462 = vmatpush1.bf16.msra.mxu0 0
        %1463 = vmatprep.subr.bf16.mxu0 0
        %1464 = vmatpush1.bf16.msra.mxu0 0
        %1465 = vmatprep.subr.bf16.mxu0 0
        %1466 = vmatpush1.bf16.msra.mxu0 0
        %1467 = vmatprep.subr.bf16.mxu0 0
        %1468 = vmatpush1.bf16.msra.mxu0 0
        %1469 = vmatprep.subr.bf16.mxu0 0
        %1470 = vmatpush1.bf16.msra.mxu0 0
        %1471 = vmatprep.subr.bf16.mxu0 0
        %1472 = vmatpush1.bf16.msra.mxu0 0
        %1473 = vmatprep.subr.bf16.mxu0 0
        %1474 = vmatpush1.bf16.msra.mxu0 0
        %1475 = vmatprep.subr.bf16.mxu0 0
        %1476 = vmatpush1.bf16.msra.mxu0 0
        %1477 = vmatprep.mubr.bf16.mxu0 0
        %1478 = vmatmul.mubr.bf16.gmra.mrb[0].mxu0 %v1440
        %v1479 = vpop.f32.mrb[0].mxu0
        %v1480 = vadd.f32 0.0, %v1479
        %v1481 = vpop.f32.mrb[0].mxu0
        %v1482 = vpop.f32.mrb[0].mxu0
        %v1483 = vadd.f32 0.0, %v1482
        %v1484 = vpop.f32.mrb[0].mxu0
        %1485 = vdwg.mxu0
        %v1486 = vadd.f32 %v1434, %v1480
        %v1487 = vadd.f32 %v1435, %v1483
        %s1488 = scalar_lea.vmem %s228, 46
        %v1489 = vld [vmem:[%s1488] sm:$0x3]
        %1490 = vrot.lane.b32.xlu0 %v1438, 124
        %v1491 = vpop.permute.xlu0 %1490
        %v1493 = vsel %vm260, %v1491, 0
        %v1496 = vsel %vm264, %v1489, 0
        %1498 = vmatprep.subr.bf16.mxu0 0
        %1499 = vmatpush1.bf16.msra.mxu0 %v1496
        %1500 = vmatprep.subr.bf16.mxu0 0
        %1501 = vmatpush1.bf16.msra.mxu0 0
        %1502 = vmatprep.subr.bf16.mxu0 0
        %1503 = vmatpush1.bf16.msra.mxu0 0
        %1504 = vmatprep.subr.bf16.mxu0 0
        %1505 = vmatpush1.bf16.msra.mxu0 0
        %1506 = vmatprep.subr.bf16.mxu0 0
        %1507 = vmatpush1.bf16.msra.mxu0 0
        %1508 = vmatprep.subr.bf16.mxu0 0
        %1509 = vmatpush1.bf16.msra.mxu0 0
        %1510 = vmatprep.subr.bf16.mxu0 0
        %1511 = vmatpush1.bf16.msra.mxu0 0
        %1512 = vmatprep.subr.bf16.mxu0 0
        %1513 = vmatpush1.bf16.msra.mxu0 0
        %1514 = vmatprep.subr.bf16.mxu0 0
        %1515 = vmatpush1.bf16.msra.mxu0 0
        %1516 = vmatprep.subr.bf16.mxu0 0
        %1517 = vmatpush1.bf16.msra.mxu0 0
        %1518 = vmatprep.subr.bf16.mxu0 0
        %1519 = vmatpush1.bf16.msra.mxu0 0
        %1520 = vmatprep.subr.bf16.mxu0 0
        %1521 = vmatpush1.bf16.msra.mxu0 0
        %1522 = vmatprep.subr.bf16.mxu0 0
        %1523 = vmatpush1.bf16.msra.mxu0 0
        %1524 = vmatprep.subr.bf16.mxu0 0
        %1525 = vmatpush1.bf16.msra.mxu0 0
        %1526 = vmatprep.subr.bf16.mxu0 0
        %1527 = vmatpush1.bf16.msra.mxu0 0
        %1528 = vmatprep.subr.bf16.mxu0 0
        %1529 = vmatpush1.bf16.msra.mxu0 0
        %1530 = vmatprep.mubr.bf16.mxu0 0
        %1531 = vmatmul.mubr.bf16.gmra.mrb[0].mxu0 %v1493
        %v1532 = vpop.f32.mrb[0].mxu0
        %v1533 = vadd.f32 0.0, %v1532
        %v1534 = vpop.f32.mrb[0].mxu0
        %v1535 = vpop.f32.mrb[0].mxu0
        %v1536 = vadd.f32 0.0, %v1535
        %v1537 = vpop.f32.mrb[0].mxu0
        %1538 = vdwg.mxu0
        %v1539 = vadd.f32 %v1486, %v1533
        %v1540 = vadd.f32 %v1487, %v1536
        %s1541 = scalar_lea.vmem %s228, 48
        %v1542 = vld [vmem:[%s1541] sm:$0x3]
        %v1543 = vrot.slane %v1328, 1
        %v1544 = vrot.slane %v1330, 2
        %v1545 = vor.u32 %v1543, %v1544
        %v1547 = vsel %vm260, %v1545, 0
        %v1550 = vsel %vm264, %v1542, 0
        %1552 = vmatprep.subr.bf16.mxu0 0
        %1553 = vmatpush1.bf16.msra.mxu0 %v1550
        %1554 = vmatprep.subr.bf16.mxu0 0
        %1555 = vmatpush1.bf16.msra.mxu0 0
        %1556 = vmatprep.subr.bf16.mxu0 0
        %1557 = vmatpush1.bf16.msra.mxu0 0
        %1558 = vmatprep.subr.bf16.mxu0 0
        %1559 = vmatpush1.bf16.msra.mxu0 0
        %1560 = vmatprep.subr.bf16.mxu0 0
        %1561 = vmatpush1.bf16.msra.mxu0 0
        %1562 = vmatprep.subr.bf16.mxu0 0
        %1563 = vmatpush1.bf16.msra.mxu0 0
        %1564 = vmatprep.subr.bf16.mxu0 0
        %1565 = vmatpush1.bf16.msra.mxu0 0
        %1566 = vmatprep.subr.bf16.mxu0 0
        %1567 = vmatpush1.bf16.msra.mxu0 0
        %1568 = vmatprep.subr.bf16.mxu0 0
        %1569 = vmatpush1.bf16.msra.mxu0 0
        %1570 = vmatprep.subr.bf16.mxu0 0
        %1571 = vmatpush1.bf16.msra.mxu0 0
        %1572 = vmatprep.subr.bf16.mxu0 0
        %1573 = vmatpush1.bf16.msra.mxu0 0
        %1574 = vmatprep.subr.bf16.mxu0 0
        %1575 = vmatpush1.bf16.msra.mxu0 0
        %1576 = vmatprep.subr.bf16.mxu0 0
        %1577 = vmatpush1.bf16.msra.mxu0 0
        %1578 = vmatprep.subr.bf16.mxu0 0
        %1579 = vmatpush1.bf16.msra.mxu0 0
        %1580 = vmatprep.subr.bf16.mxu0 0
        %1581 = vmatpush1.bf16.msra.mxu0 0
        %1582 = vmatprep.subr.bf16.mxu0 0
        %1583 = vmatpush1.bf16.msra.mxu0 0
        %1584 = vmatprep.mubr.bf16.mxu0 0
        %1585 = vmatmul.mubr.bf16.gmra.mrb[0].mxu0 %v1547
        %v1586 = vpop.f32.mrb[0].mxu0
        %v1587 = vadd.f32 0.0, %v1586
        %v1588 = vpop.f32.mrb[0].mxu0
        %v1589 = vpop.f32.mrb[0].mxu0
        %v1590 = vadd.f32 0.0, %v1589
        %v1591 = vpop.f32.mrb[0].mxu0
        %1592 = vdwg.mxu0
        %v1593 = vadd.f32 %v1539, %v1587
        %v1594 = vadd.f32 %v1540, %v1590
        %s1595 = scalar_lea.vmem %s228, 50
        %v1596 = vld [vmem:[%s1595] sm:$0x3]
        %1597 = vrot.lane.b32.xlu0 %v1545, 124
        %v1598 = vpop.permute.xlu0 %1597
        %v1600 = vsel %vm260, %v1598, 0
        %v1603 = vsel %vm264, %v1596, 0
        %1605 = vmatprep.subr.bf16.mxu0 0
        %1606 = vmatpush1.bf16.msra.mxu0 %v1603
        %1607 = vmatprep.subr.bf16.mxu0 0
        %1608 = vmatpush1.bf16.msra.mxu0 0
        %1609 = vmatprep.subr.bf16.mxu0 0
        %1610 = vmatpush1.bf16.msra.mxu0 0
        %1611 = vmatprep.subr.bf16.mxu0 0
        %1612 = vmatpush1.bf16.msra.mxu0 0
        %1613 = vmatprep.subr.bf16.mxu0 0
        %1614 = vmatpush1.bf16.msra.mxu0 0
        %1615 = vmatprep.subr.bf16.mxu0 0
        %1616 = vmatpush1.bf16.msra.mxu0 0
        %1617 = vmatprep.subr.bf16.mxu0 0
        %1618 = vmatpush1.bf16.msra.mxu0 0
        %1619 = vmatprep.subr.bf16.mxu0 0
        %1620 = vmatpush1.bf16.msra.mxu0 0
        %1621 = vmatprep.subr.bf16.mxu0 0
        %1622 = vmatpush1.bf16.msra.mxu0 0
        %1623 = vmatprep.subr.bf16.mxu0 0
        %1624 = vmatpush1.bf16.msra.mxu0 0
        %1625 = vmatprep.subr.bf16.mxu0 0
        %1626 = vmatpush1.bf16.msra.mxu0 0
        %1627 = vmatprep.subr.bf16.mxu0 0
        %1628 = vmatpush1.bf16.msra.mxu0 0
        %1629 = vmatprep.subr.bf16.mxu0 0
        %1630 = vmatpush1.bf16.msra.mxu0 0
        %1631 = vmatprep.subr.bf16.mxu0 0
        %1632 = vmatpush1.bf16.msra.mxu0 0
        %1633 = vmatprep.subr.bf16.mxu0 0
        %1634 = vmatpush1.bf16.msra.mxu0 0
        %1635 = vmatprep.subr.bf16.mxu0 0
        %1636 = vmatpush1.bf16.msra.mxu0 0
        %1637 = vmatprep.mubr.bf16.mxu0 0
        %1638 = vmatmul.mubr.bf16.gmra.mrb[0].mxu0 %v1600
        %v1639 = vpop.f32.mrb[0].mxu0
        %v1640 = vadd.f32 0.0, %v1639
        %v1641 = vpop.f32.mrb[0].mxu0
        %v1642 = vpop.f32.mrb[0].mxu0
        %v1643 = vadd.f32 0.0, %v1642
        %v1644 = vpop.f32.mrb[0].mxu0
        %1645 = vdwg.mxu0
        %v1646 = vadd.f32 %v1593, %v1640
        %v1647 = vadd.f32 %v1594, %v1643
        %s1648 = scalar_lea.vmem %s228, 52
        %v1649 = vld [vmem:[%s1648] sm:$0x3]
        %v1650 = vrot.slane %v1220, 2
        %v1652 = vsel %vm260, %v1650, 0
        %v1655 = vsel %vm264, %v1649, 0
        %1657 = vmatprep.subr.bf16.mxu0 0
        %1658 = vmatpush1.bf16.msra.mxu0 %v1655
        %1659 = vmatprep.subr.bf16.mxu0 0
        %1660 = vmatpush1.bf16.msra.mxu0 0
        %1661 = vmatprep.subr.bf16.mxu0 0
        %1662 = vmatpush1.bf16.msra.mxu0 0
        %1663 = vmatprep.subr.bf16.mxu0 0
        %1664 = vmatpush1.bf16.msra.mxu0 0
        %1665 = vmatprep.subr.bf16.mxu0 0
        %1666 = vmatpush1.bf16.msra.mxu0 0
        %1667 = vmatprep.subr.bf16.mxu0 0
        %1668 = vmatpush1.bf16.msra.mxu0 0
        %1669 = vmatprep.subr.bf16.mxu0 0
        %1670 = vmatpush1.bf16.msra.mxu0 0
        %1671 = vmatprep.subr.bf16.mxu0 0
        %1672 = vmatpush1.bf16.msra.mxu0 0
        %1673 = vmatprep.subr.bf16.mxu0 0
        %1674 = vmatpush1.bf16.msra.mxu0 0
        %1675 = vmatprep.subr.bf16.mxu0 0
        %1676 = vmatpush1.bf16.msra.mxu0 0
        %1677 = vmatprep.subr.bf16.mxu0 0
        %1678 = vmatpush1.bf16.msra.mxu0 0
        %1679 = vmatprep.subr.bf16.mxu0 0
        %1680 = vmatpush1.bf16.msra.mxu0 0
        %1681 = vmatprep.subr.bf16.mxu0 0
        %1682 = vmatpush1.bf16.msra.mxu0 0
        %1683 = vmatprep.subr.bf16.mxu0 0
        %1684 = vmatpush1.bf16.msra.mxu0 0
        %1685 = vmatprep.subr.bf16.mxu0 0
        %1686 = vmatpush1.bf16.msra.mxu0 0
        %1687 = vmatprep.subr.bf16.mxu0 0
        %1688 = vmatpush1.bf16.msra.mxu0 0
        %1689 = vmatprep.mubr.bf16.mxu0 0
        %1690 = vmatmul.mubr.bf16.gmra.mrb[0].mxu0 %v1652
        %v1691 = vpop.f32.mrb[0].mxu0
        %v1692 = vadd.f32 0.0, %v1691
        %v1693 = vpop.f32.mrb[0].mxu0
        %v1694 = vpop.f32.mrb[0].mxu0
        %v1695 = vadd.f32 0.0, %v1694
        %v1696 = vpop.f32.mrb[0].mxu0
        %1697 = vdwg.mxu0
        %v1698 = vadd.f32 %v1646, %v1692
        %v1699 = vadd.f32 %v1647, %v1695
        %v1701 = vlaneseq
        %v1702 = vshrl.u32 %v1701, 7
        %v1703 = vsub.s32 0, %v1702
        %v1704 = vrot.slane %v242, %v1703
        %v1706 = vadd.f32 %v1698, %v1704
        %v1707 = vadd.f32 %v1699, %v1704
        %vm1708 = vcmp.ge.f32.partialorder %v1706, 0.0
        %vm1709 = vcmp.ge.f32.partialorder %v1707, 0.0
        %v1710 = vmul.f32 %v1706, 0.1
        %v1711 = vmul.f32 %v1707, 0.1
        %v1712 = vsel %vm1708, %v1706, %v1710
        %v1713 = vsel %vm1709, %v1707, %v1711
        %s1714 = scalar_lea.vmem %s240, %s249
        %vm1715 = vcmask 64512
        %1716 = vst.msk [vmem:[%s1714] sm:$0xff] %vm1715, %v1712
        %vm1717 = vcmask 59392
        %1718 = vst.msk [vmem:[%s1714 + $0x8] sm:$0x7] %vm1717, %v1713
      $region37: #{tpu_custom_call.1} parent=31 // loop_footer
        %s248 = sadd.s32 1, %s244
      $region38: #{tpu_custom_call.1} parent=31 // loop_footer_branch
        %243 = sbr.rel target = $region34
      $region39: #{tpu_custom_call.1} parent=31 // loop_exit
        _
      %p1719 = scmp.lt.s32.totalorder %s18, 1
      %s1720 = scalar_select %p1719, %s18, 1
      %p1721 = scmp.lt.s32.totalorder %s19, 1
      %s1722 = scalar_select %p1721, %s19, 1
      %s1723 = smul.addr %s1722, 12
      %s1724 = smul.addr %s1720, 24
      %s1725 = sadd.s32 %s1723, %s1724
      %s1726 = smul.addr %s1725, 8
      %s1727 = scalar_lea.vmem %s3, %s1726
      // Predicated region
      $region40: #{tpu_custom_call.1} parent=31 // pred_check
        %p1728 = pneg %p126
      $region41: #{tpu_custom_call.1} parent=31 // pred_check_branch
        %1730 = sbr.rel (%p1728) target = $region43
      $region42: #{tpu_custom_call.1} parent=31 // pred_region
        _
      $region43: #{tpu_custom_call.1} parent=31 // pred_fallthru
        _
    $region32: #{tpu_custom_call.1} parent=5 // pred_fallthru
      _
    %p1731 = scmp.le.s32.totalorder 2, %s9
    // Predicated region
    $region44: #{tpu_custom_call.1} parent=5 // pred_check
      %p1732 = pneg %p1731
    $region45: #{tpu_custom_call.1} parent=5 // pred_check_branch
      %1734 = sbr.rel (%p1732) target = $region47
    $region46: #{tpu_custom_call.1} parent=5 // pred_region
      %s1735 = ssub.s32 %s9, 2
      // Predicated region
      $region48: #{tpu_custom_call.1} parent=46 // pred_check
        %p1736 = pneg %p132
      $region49: #{tpu_custom_call.1} parent=46 // pred_check_branch
        %1738 = sbr.rel (%p1736) target = $region51
      $region50: #{tpu_custom_call.1} parent=46 // pred_region
        %p1739 = scmp.lt.s32.totalorder %s20, 1
        %s1740 = scalar_select %p1739, %s20, 1
        %p1741 = scmp.lt.s32.totalorder %s21, 1
        %s1742 = scalar_select %p1741, %s21, 1
        %s1743 = smul.addr %s1742, 12
        %s1744 = smul.addr %s1740, 24
        %s1745 = sadd.s32 %s1743, %s1744
        %s1746 = smul.addr %s1745, 8
        %s1747 = scalar_lea.vmem %s3, %s1746
      $region51: #{tpu_custom_call.1} parent=46 // pred_fallthru
        _
    $region47: #{tpu_custom_call.1} parent=5 // pred_fallthru
      _
  $region6: #{tpu_custom_call.1} parent=0 // loop_footer
    %s13 = sadd.s32 1, %s9
  $region7: #{tpu_custom_call.1} parent=0 // loop_footer_branch
    %8 = sbr.rel target = $region3
  $region8: #{tpu_custom_call.1} parent=0 // loop_exit
    _

</llo_original>
